<compile_context>
chip_gen: v6e
topology: v6e:2x2x1
jax: 0.10.0
libtpu: 0.0.40
codegen_flags: <defaults>
</compile_context>

<pallas_src>
import functools
import math

import jax
import jax.numpy as jnp
import numpy as np
from jax import lax
from jax.experimental import pallas as pl
from jax.experimental.pallas import tpu as pltpu


def _layernorm(v, g, b, eps=1e-5):
    mu = jnp.mean(v, axis=-1, keepdims=True)
    var = jnp.mean((v - mu) ** 2, axis=-1, keepdims=True)
    return (v - mu) * lax.rsqrt(var + eps) * g + b


def _gelu_tanh(x):
    # PyTorch nn.GELU(approximate='tanh')
    return 0.5 * x * (1.0 + jnp.tanh(0.7978845608028654 * (x + 0.044715 * x * x * x)))


def _choose_tq(T):
    """Pick a query-tile size: prefer 128-multiples, else the full sequence."""
    for cand in (256, 128):
        if T % cand == 0:
            return cand
    return T


def _vmem_limit_bytes(T, tq, C, n_head):
    bf16, f32 = 2, 4
    w = (C * 3 * C + C * C + C * 4 * C + 4 * C * C) * bf16            # bf16 weights
    p = (3 * C + C + 4 * C + C + 4 * C + 2 * C) * f32                  # biases + LN params
    io = (T * C + tq * C) * f32                                        # x block + out tile
    act = (T * 3 * C + 2 * n_head * tq * T + 2 * tq * 4 * C) * f32     # kv / scores / mlp temps
    est = 2 * (w + io) + p + act                                        # double-buffered blocks
    return int(min(64 * 1024 * 1024, max(32 * 1024 * 1024, 2 * est)))


def block_kernel(n_head, tq,
                 x_ref,
                 ln1g_ref, ln1b_ref,
                 wqkv_ref, bqkv_ref,
                 wo_ref, bo_ref,
                 ln2g_ref, ln2b_ref,
                 wfc_ref, bfc_ref,
                 wpr_ref, bpr_ref,
                 out_ref):
    T, C = x_ref.shape                      # batch dim squeezed out by BlockSpec
    H = n_head
    hd = C // H
    scale = 1.0 / math.sqrt(hd)

    q_start = pl.multiple_of(pl.program_id(1) * tq, tq)

    ln1g = ln1g_ref[...]                    # (1, C) f32
    ln1b = ln1b_ref[...]
    bqkv = bqkv_ref[...]                    # (1, 3C) f32
    wqkv = wqkv_ref[...]                    # (C, 3C) bf16

    # ---- ln_1 + causal self-attention (bf16 operands, f32 accumulation) ----
    x_full = x_ref[...].astype(jnp.float32)                       # (T, C)
    x_q = x_ref[pl.ds(q_start, tq), :].astype(jnp.float32)        # (tq, C)

    # K/V from the full sequence.
    h_full = _layernorm(x_full, ln1g, ln1b).astype(jnp.bfloat16)  # (T, C)
    kv = jnp.dot(h_full, wqkv[:, C:],
                 preferred_element_type=jnp.float32) + bqkv[:, C:]       # (T, 2C) f32
    k = kv[:, :C].astype(jnp.bfloat16).reshape(T, H, hd)
    v = kv[:, C:].astype(jnp.bfloat16).reshape(T, H, hd)
    k = jnp.transpose(k, (1, 0, 2))                                # (H, T, hd)
    v = jnp.transpose(v, (1, 0, 2))                                # (H, T, hd)

    # Q from the query tile only; fold 1/sqrt(hd) into q.
    h_q = _layernorm(x_q, ln1g, ln1b).astype(jnp.bfloat16)         # (tq, C)
    q = jnp.dot(h_q, wqkv[:, :C],
                preferred_element_type=jnp.float32) + bqkv[:, :C]  # (tq, C) f32
    q = (q * scale).astype(jnp.bfloat16).reshape(tq, H, hd)
    q = jnp.transpose(q, (1, 0, 2))                                # (H, tq, hd)

    # Batched-head scores; MXU consumes k untransposed via the contraction dims.
    s = jnp.einsum('hqd,hkd->hqk', q, k,
                   preferred_element_type=jnp.float32)             # (H, tq, T) f32

    # Causal mask for this query tile only.
    row = q_start + lax.broadcasted_iota(jnp.int32, (tq, T), 0)
    col = lax.broadcasted_iota(jnp.int32, (tq, T), 1)
    s = jnp.where((row >= col)[None, :, :], s, -1e30)

    m = jnp.max(s, axis=-1, keepdims=True)
    p = jnp.exp(s - m)
    p = p * pl.reciprocal(jnp.sum(p, axis=-1, keepdims=True), approx=True)

    y = jnp.einsum('hqk,hkd->hqd', p.astype(jnp.bfloat16), v,
                   preferred_element_type=jnp.float32)             # (H, tq, hd) f32
    y = jnp.transpose(y, (1, 0, 2)).reshape(tq, C)                 # (tq, C)

    att = jnp.dot(y.astype(jnp.bfloat16), wo_ref[...],
                  preferred_element_type=jnp.float32) + bo_ref[...]

    resid_mid = x_q + att                                          # (tq, C) f32

    # ---- ln_2 + MLP ----
    h2 = _layernorm(resid_mid, ln2g_ref[...], ln2b_ref[...]).astype(jnp.bfloat16)
    ff = jnp.dot(h2, wfc_ref[...],
                 preferred_element_type=jnp.float32) + bfc_ref[...]
    ff = _gelu_tanh(ff).astype(jnp.bfloat16)
    ff = jnp.dot(ff, wpr_ref[...],
                 preferred_element_type=jnp.float32) + bpr_ref[...]

    out_ref[...] = (resid_mid + ff).astype(out_ref.dtype)


def block_forward(x, params, n_head, tq=None):
    B, T, C = x.shape
    assert C % n_head == 0
    if tq is None:
        tq = _choose_tq(T)
    assert T % tq == 0
    nq = T // tq

    (ln1g, ln1b, wqkv, bqkv, wo, bo, ln2g, ln2b, wfc, bfc, wpr, bpr) = params

    # Weights in bf16 (MXU-native); biases / LN params stay f32 for the f32 accumulators.
    wqkv = wqkv.astype(jnp.bfloat16)
    wo = wo.astype(jnp.bfloat16)
    wfc = wfc.astype(jnp.bfloat16)
    wpr = wpr.astype(jnp.bfloat16)

    def wspec(arr):
        # Constant block index -> fetched once, resident across the grid.
        return pl.BlockSpec(arr.shape, lambda b, qi: (0, 0))

    grid_spec = pltpu.PrefetchScalarGridSpec(
        num_scalar_prefetch=0,
        grid=(B, nq),
        in_specs=[
            pl.BlockSpec((None, T, C), lambda b, qi: (b, 0, 0)),   # x (batch dim squeezed)
            wspec(ln1g), wspec(ln1b),
            wspec(wqkv), wspec(bqkv),
            wspec(wo), wspec(bo),
            wspec(ln2g), wspec(ln2b),
            wspec(wfc), wspec(bfc),
            wspec(wpr), wspec(bpr),
        ],
        out_specs=pl.BlockSpec((None, tq, C), lambda b, qi: (b, qi, 0)),
    )

    return pl.pallas_call(
        functools.partial(block_kernel, n_head, tq),
        out_shape=jax.ShapeDtypeStruct((B, T, C), x.dtype),
        grid_spec=grid_spec,
        compiler_params=pltpu.CompilerParams(
            dimension_semantics=("parallel", "parallel"),
            vmem_limit_bytes=_vmem_limit_bytes(T, tq, C, n_head),
        ),
    )(x, ln1g, ln1b, wqkv, bqkv, wo, bo, ln2g, ln2b, wfc, bfc, wpr, bpr)


def block_reference(x, params, n_head):
    """Pure-JAX f32 reference mirroring the PyTorch module exactly."""
    (ln1g, ln1b, wqkv, bqkv, wo, bo, ln2g, ln2b, wfc, bfc, wpr, bpr) = params
    B, T, C = x.shape
    hd = C // n_head

    h = _layernorm(x, ln1g[0], ln1b[0])
    qkv = h @ wqkv + bqkv[0]
    q, k, v = jnp.split(qkv, 3, axis=-1)
    q = q.reshape(B, T, n_head, hd).transpose(0, 2, 1, 3)
    k = k.reshape(B, T, n_head, hd).transpose(0, 2, 1, 3)
    v = v.reshape(B, T, n_head, hd).transpose(0, 2, 1, 3)
    s = jnp.einsum('bhqd,bhkd->bhqk', q, k) / math.sqrt(hd)
    mask = jnp.tril(jnp.ones((T, T), bool))
    s = jnp.where(mask, s, -1e30)
    p = jax.nn.softmax(s, axis=-1)
    y = jnp.einsum('bhqk,bhkd->bhqd', p, v).transpose(0, 2, 1, 3).reshape(B, T, C)
    att = y @ wo + bo[0]
    resid_mid = x + att

    h2 = _layernorm(resid_mid, ln2g[0], ln2b[0])
    ff = _gelu_tanh(h2 @ wfc + bfc[0]) @ wpr + bpr[0]
    return resid_mid + ff


if __name__ == "__main__":
    B, T, C, H = 2, 8, 32, 4   # batch, seq, n_embd, n_head
    key = jax.random.PRNGKey(0)
    ks = jax.random.split(key, 16)

    x = jax.random.normal(ks[0], (B, T, C), jnp.float32)

    # Deterministic synthetic parameters (Linear weights stored as (in, out)).
    ln1g = jnp.ones((1, C), jnp.float32)
    ln1b = jnp.zeros((1, C), jnp.float32)
    wqkv = 0.05 * jax.random.normal(ks[1], (C, 3 * C), jnp.float32)
    bqkv = 0.01 * jax.random.normal(ks[2], (1, 3 * C), jnp.float32)
    wo = 0.05 * jax.random.normal(ks[3], (C, C), jnp.float32)
    bo = 0.01 * jax.random.normal(ks[4], (1, C), jnp.float32)
    ln2g = jnp.ones((1, C), jnp.float32)
    ln2b = jnp.zeros((1, C), jnp.float32)
    wfc = 0.05 * jax.random.normal(ks[5], (C, 4 * C), jnp.float32)
    bfc = 0.01 * jax.random.normal(ks[6], (1, 4 * C), jnp.float32)
    wpr = 0.05 * jax.random.normal(ks[7], (4 * C, C), jnp.float32)
    bpr = 0.01 * jax.random.normal(ks[8], (1, C), jnp.float32)

    params = (ln1g, ln1b, wqkv, bqkv, wo, bo, ln2g, ln2b, wfc, bfc, wpr, bpr)

    out = block_forward(x, params, n_head=H)
    jax.block_until_ready(out)

    ref = block_reference(x, params, n_head=H)
    # bf16 matmul operands + approx reciprocal vs. f32 reference -> loosened tolerance.
    np.testing.assert_allclose(np.asarray(out), np.asarray(ref), rtol=2e-2, atol=2e-2)

    print("KERNEL_OK")
</pallas_src>

<mosaic_0001>
module attributes {stable_mosaic.version = 11 : i64} {
  func.func @block_kernel(%arg0: i32, %arg1: i32, %arg2: memref<1x8x32xf32, #tpu.memory_space<vmem>>, %arg3: memref<1x32xf32, #tpu.memory_space<vmem>>, %arg4: memref<1x32xf32, #tpu.memory_space<vmem>>, %arg5: memref<32x96xbf16, #tpu.memory_space<vmem>>, %arg6: memref<1x96xf32, #tpu.memory_space<vmem>>, %arg7: memref<32x32xbf16, #tpu.memory_space<vmem>>, %arg8: memref<1x32xf32, #tpu.memory_space<vmem>>, %arg9: memref<1x32xf32, #tpu.memory_space<vmem>>, %arg10: memref<1x32xf32, #tpu.memory_space<vmem>>, %arg11: memref<32x128xbf16, #tpu.memory_space<vmem>>, %arg12: memref<1x128xf32, #tpu.memory_space<vmem>>, %arg13: memref<128x32xbf16, #tpu.memory_space<vmem>>, %arg14: memref<1x32xf32, #tpu.memory_space<vmem>>, %arg15: memref<1x8x32xf32, #tpu.memory_space<vmem>>) attributes {dimension_semantics = [#tpu.dimension_semantics<parallel>, #tpu.dimension_semantics<parallel>], iteration_bounds = array<i64: 2, 1>, scalar_prefetch = 0 : i64, scratch_operands = 0 : i64, tpu.core_type = #tpu.core_type<tc>, window_params = [{transform_indices = @transform_0, window_bounds = array<i64: 1, 8, 32>}, {pipeline_mode = #tpu.pipeline_mode<synchronous>, transform_indices = @transform_1, window_bounds = array<i64: 1, 32>}, {pipeline_mode = #tpu.pipeline_mode<synchronous>, transform_indices = @transform_2, window_bounds = array<i64: 1, 32>}, {pipeline_mode = #tpu.pipeline_mode<synchronous>, transform_indices = @transform_3, window_bounds = array<i64: 32, 96>}, {pipeline_mode = #tpu.pipeline_mode<synchronous>, transform_indices = @transform_4, window_bounds = array<i64: 1, 96>}, {pipeline_mode = #tpu.pipeline_mode<synchronous>, transform_indices = @transform_5, window_bounds = array<i64: 32, 32>}, {pipeline_mode = #tpu.pipeline_mode<synchronous>, transform_indices = @transform_6, window_bounds = array<i64: 1, 32>}, {pipeline_mode = #tpu.pipeline_mode<synchronous>, transform_indices = @transform_7, window_bounds = array<i64: 1, 32>}, {pipeline_mode = #tpu.pipeline_mode<synchronous>, transform_indices = @transform_8, window_bounds = array<i64: 1, 32>}, {pipeline_mode = #tpu.pipeline_mode<synchronous>, transform_indices = @transform_9, window_bounds = array<i64: 32, 128>}, {pipeline_mode = #tpu.pipeline_mode<synchronous>, transform_indices = @transform_10, window_bounds = array<i64: 1, 128>}, {pipeline_mode = #tpu.pipeline_mode<synchronous>, transform_indices = @transform_11, window_bounds = array<i64: 128, 32>}, {pipeline_mode = #tpu.pipeline_mode<synchronous>, transform_indices = @transform_12, window_bounds = array<i64: 1, 32>}, {transform_indices = @transform_13, window_bounds = array<i64: 1, 8, 32>}]} {
    %c8_i32 = arith.constant 8 : i32
    %0 = arith.muli %arg1, %c8_i32 : i32
    %1 = tpu.assume_multiple %0, 8 : i32
    %c0 = arith.constant 0 : index
    %c0_0 = arith.constant 0 : index
    %2 = vector.load %arg3[%c0, %c0_0] : memref<1x32xf32, #tpu.memory_space<vmem>>, vector<1x32xf32>
    %c0_1 = arith.constant 0 : index
    %c0_2 = arith.constant 0 : index
    %3 = vector.load %arg4[%c0_1, %c0_2] : memref<1x32xf32, #tpu.memory_space<vmem>>, vector<1x32xf32>
    %c0_3 = arith.constant 0 : index
    %c0_4 = arith.constant 0 : index
    %4 = vector.load %arg6[%c0_3, %c0_4] : memref<1x96xf32, #tpu.memory_space<vmem>>, vector<1x96xf32>
    %c0_5 = arith.constant 0 : index
    %c0_6 = arith.constant 0 : index
    %5 = vector.load %arg5[%c0_5, %c0_6] : memref<32x96xbf16, #tpu.memory_space<vmem>>, vector<32x96xbf16>
    %c0_7 = arith.constant 0 : index
    %c0_8 = arith.constant 0 : index
    %c0_9 = arith.constant 0 : index
    %6 = vector.load %arg2[%c0_7, %c0_8, %c0_9] : memref<1x8x32xf32, #tpu.memory_space<vmem>>, vector<1x8x32xf32>
    %7 = vector.shape_cast %6 : vector<1x8x32xf32> to vector<8x32xf32>
    %c0_10 = arith.constant 0 : index
    %8 = arith.index_cast %1 : i32 to index
    %c0_11 = arith.constant 0 : index
    %9 = vector.load %arg2[%c0_10, %8, %c0_11] : memref<1x8x32xf32, #tpu.memory_space<vmem>>, vector<1x8x32xf32>
    %10 = vector.shape_cast %9 : vector<1x8x32xf32> to vector<8x32xf32>
    %cst = arith.constant dense<0.000000e+00> : vector<8xf32>
    %11 = vector.multi_reduction <add>, %7, %cst [1] : vector<8x32xf32> to vector<8xf32>
    %12 = vector.shape_cast %11 : vector<8xf32> to vector<8x1xf32>
    %cst_12 = arith.constant 3.200000e+01 : f32
    %13 = vector.broadcast %cst_12 : f32 to vector<8x1xf32>
    %14 = arith.divf %12, %13 : vector<8x1xf32>
    %15 = vector.broadcast %14 : vector<8x1xf32> to vector<8x32xf32>
    %16 = arith.subf %7, %15 : vector<8x32xf32>
    %17 = arith.mulf %16, %16 : vector<8x32xf32>
    %cst_13 = arith.constant dense<0.000000e+00> : vector<8xf32>
    %18 = vector.multi_reduction <add>, %17, %cst_13 [1] : vector<8x32xf32> to vector<8xf32>
    %19 = vector.shape_cast %18 : vector<8xf32> to vector<8x1xf32>
    %cst_14 = arith.constant 3.200000e+01 : f32
    %20 = vector.broadcast %cst_14 : f32 to vector<8x1xf32>
    %21 = arith.divf %19, %20 : vector<8x1xf32>
    %22 = vector.broadcast %14 : vector<8x1xf32> to vector<8x32xf32>
    %23 = arith.subf %7, %22 : vector<8x32xf32>
    %cst_15 = arith.constant 9.99999974E-6 : f32
    %24 = vector.broadcast %cst_15 : f32 to vector<8x1xf32>
    %25 = arith.addf %21, %24 : vector<8x1xf32>
    %26 = math.rsqrt %25 : vector<8x1xf32>
    %27 = vector.broadcast %26 : vector<8x1xf32> to vector<8x32xf32>
    %28 = arith.mulf %23, %27 : vector<8x32xf32>
    %29 = vector.broadcast %2 : vector<1x32xf32> to vector<8x32xf32>
    %30 = arith.mulf %28, %29 : vector<8x32xf32>
    %31 = vector.broadcast %3 : vector<1x32xf32> to vector<8x32xf32>
    %32 = arith.addf %30, %31 : vector<8x32xf32>
    %33 = arith.truncf %32 : vector<8x32xf32> to vector<8x32xbf16>
    %34 = vector.extract_strided_slice %5 {offsets = [0, 32], sizes = [32, 64], strides = [1, 1]} : vector<32x96xbf16> to vector<32x64xbf16>
    %cst_16 = arith.constant dense<0.000000e+00> : vector<8x64xf32>
    %35 = tpu.matmul %33, %34, %cst_16 {dimension_numbers = #tpu.dot_dimension_numbers<[1], [0], [0], [1], [0, 0, 1, 1], [], []>} : vector<8x32xbf16>, vector<32x64xbf16>, vector<8x64xf32> -> vector<8x64xf32>
    %36 = vector.extract_strided_slice %4 {offsets = [0, 32], sizes = [1, 64], strides = [1, 1]} : vector<1x96xf32> to vector<1x64xf32>
    %37 = vector.broadcast %36 : vector<1x64xf32> to vector<8x64xf32>
    %38 = arith.addf %35, %37 : vector<8x64xf32>
    %39 = vector.extract_strided_slice %38 {offsets = [0, 0], sizes = [8, 32], strides = [1, 1]} : vector<8x64xf32> to vector<8x32xf32>
    %40 = arith.truncf %39 : vector<8x32xf32> to vector<8x32xbf16>
    %41 = vector.shape_cast %40 : vector<8x32xbf16> to vector<8x4x8xbf16>
    %42 = vector.extract_strided_slice %38 {offsets = [0, 32], sizes = [8, 32], strides = [1, 1]} : vector<8x64xf32> to vector<8x32xf32>
    %43 = arith.truncf %42 : vector<8x32xf32> to vector<8x32xbf16>
    %44 = vector.shape_cast %43 : vector<8x32xbf16> to vector<8x4x8xbf16>
    %45 = tpu.transpose %41, [1, 0, 2] : vector<8x4x8xbf16> -> vector<4x8x8xbf16>
    %46 = tpu.transpose %44, [1, 0, 2] : vector<8x4x8xbf16> -> vector<4x8x8xbf16>
    %cst_17 = arith.constant dense<0.000000e+00> : vector<8xf32>
    %47 = vector.multi_reduction <add>, %10, %cst_17 [1] : vector<8x32xf32> to vector<8xf32>
    %48 = vector.shape_cast %47 : vector<8xf32> to vector<8x1xf32>
    %cst_18 = arith.constant 3.200000e+01 : f32
    %49 = vector.broadcast %cst_18 : f32 to vector<8x1xf32>
    %50 = arith.divf %48, %49 : vector<8x1xf32>
    %51 = vector.broadcast %50 : vector<8x1xf32> to vector<8x32xf32>
    %52 = arith.subf %10, %51 : vector<8x32xf32>
    %53 = arith.mulf %52, %52 : vector<8x32xf32>
    %cst_19 = arith.constant dense<0.000000e+00> : vector<8xf32>
    %54 = vector.multi_reduction <add>, %53, %cst_19 [1] : vector<8x32xf32> to vector<8xf32>
    %55 = vector.shape_cast %54 : vector<8xf32> to vector<8x1xf32>
    %cst_20 = arith.constant 3.200000e+01 : f32
    %56 = vector.broadcast %cst_20 : f32 to vector<8x1xf32>
    %57 = arith.divf %55, %56 : vector<8x1xf32>
    %58 = vector.broadcast %50 : vector<8x1xf32> to vector<8x32xf32>
    %59 = arith.subf %10, %58 : vector<8x32xf32>
    %cst_21 = arith.constant 9.99999974E-6 : f32
    %60 = vector.broadcast %cst_21 : f32 to vector<8x1xf32>
    %61 = arith.addf %57, %60 : vector<8x1xf32>
    %62 = math.rsqrt %61 : vector<8x1xf32>
    %63 = vector.broadcast %62 : vector<8x1xf32> to vector<8x32xf32>
    %64 = arith.mulf %59, %63 : vector<8x32xf32>
    %65 = vector.broadcast %2 : vector<1x32xf32> to vector<8x32xf32>
    %66 = arith.mulf %64, %65 : vector<8x32xf32>
    %67 = vector.broadcast %3 : vector<1x32xf32> to vector<8x32xf32>
    %68 = arith.addf %66, %67 : vector<8x32xf32>
    %69 = arith.truncf %68 : vector<8x32xf32> to vector<8x32xbf16>
    %70 = vector.extract_strided_slice %5 {offsets = [0, 0], sizes = [32, 32], strides = [1, 1]} : vector<32x96xbf16> to vector<32x32xbf16>
    %cst_22 = arith.constant dense<0.000000e+00> : vector<8x32xf32>
    %71 = tpu.matmul %69, %70, %cst_22 {dimension_numbers = #tpu.dot_dimension_numbers<[1], [0], [0], [1], [0, 0, 1, 1], [], []>} : vector<8x32xbf16>, vector<32x32xbf16>, vector<8x32xf32> -> vector<8x32xf32>
    %72 = vector.extract_strided_slice %4 {offsets = [0, 0], sizes = [1, 32], strides = [1, 1]} : vector<1x96xf32> to vector<1x32xf32>
    %73 = vector.broadcast %72 : vector<1x32xf32> to vector<8x32xf32>
    %74 = arith.addf %71, %73 : vector<8x32xf32>
    %cst_23 = arith.constant 0.353553385 : f32
    %75 = vector.broadcast %cst_23 : f32 to vector<8x32xf32>
    %76 = arith.mulf %74, %75 : vector<8x32xf32>
    %77 = arith.truncf %76 : vector<8x32xf32> to vector<8x32xbf16>
    %78 = vector.shape_cast %77 : vector<8x32xbf16> to vector<8x4x8xbf16>
    %79 = tpu.transpose %78, [1, 0, 2] : vector<8x4x8xbf16> -> vector<4x8x8xbf16>
    "tpu.trace_start"() <{level = 10 : i32, message = "hqd,hkd->hqk"}> : () -> ()
    %cst_24 = arith.constant dense<0.000000e+00> : vector<4x8x8xf32>
    %80 = tpu.matmul %79, %45, %cst_24 {dimension_numbers = #tpu.dot_dimension_numbers<[2], [2], [1], [1], [0, 0, 0, 1, 1, 1], [0], [0]>} : vector<4x8x8xbf16>, vector<4x8x8xbf16>, vector<4x8x8xf32> -> vector<4x8x8xf32>
    "tpu.trace_stop"() : () -> ()
    %81 = tpu.iota {dimensions = array<i32: 0>} : vector<8x8xi32>
    %82 = vector.broadcast %1 : i32 to vector<8x8xi32>
    %83 = arith.addi %82, %81 : vector<8x8xi32>
    %84 = tpu.iota {dimensions = array<i32: 1>} : vector<8x8xi32>
    %85 = arith.cmpi sge, %83, %84 : vector<8x8xi32>
    %86 = vector.shape_cast %85 : vector<8x8xi1> to vector<1x8x8xi1>
    %cst_25 = arith.constant -1.000000e+30 : f32
    %87 = vector.shape_cast %86 : vector<1x8x8xi1> to vector<1x8x8xi1>
    %88 = vector.broadcast %87 : vector<1x8x8xi1> to vector<4x8x8xi1>
    %89 = vector.broadcast %cst_25 : f32 to vector<4x8x8xf32>
    %90 = arith.select %88, %80, %89 : vector<4x8x8xi1>, vector<4x8x8xf32>
    %cst_26 = arith.constant dense<0xFF800000> : vector<4x8xf32>
    %91 = vector.multi_reduction <maximumf>, %90, %cst_26 [2] : vector<4x8x8xf32> to vector<4x8xf32>
    %92 = vector.shape_cast %91 : vector<4x8xf32> to vector<4x8x1xf32>
    %93 = vector.broadcast %92 : vector<4x8x1xf32> to vector<4x8x8xf32>
    %94 = arith.subf %90, %93 : vector<4x8x8xf32>
    %95 = math.exp %94 : vector<4x8x8xf32>
    %cst_27 = arith.constant dense<0.000000e+00> : vector<4x8xf32>
    %96 = vector.multi_reduction <add>, %95, %cst_27 [2] : vector<4x8x8xf32> to vector<4x8xf32>
    %97 = vector.shape_cast %96 : vector<4x8xf32> to vector<4x8x1xf32>
    %98 = tpu.reciprocal %97 {approx = true} : vector<4x8x1xf32> -> vector<4x8x1xf32>
    %99 = vector.broadcast %98 : vector<4x8x1xf32> to vector<4x8x8xf32>
    %100 = arith.mulf %95, %99 : vector<4x8x8xf32>
    %101 = arith.truncf %100 : vector<4x8x8xf32> to vector<4x8x8xbf16>
    "tpu.trace_start"() <{level = 10 : i32, message = "hqk,hkd->hqd"}> : () -> ()
    %cst_28 = arith.constant dense<0.000000e+00> : vector<4x8x8xf32>
    %102 = tpu.matmul %101, %46, %cst_28 {dimension_numbers = #tpu.dot_dimension_numbers<[2], [1], [1], [2], [0, 0, 0, 1, 1, 2], [0], [0]>} : vector<4x8x8xbf16>, vector<4x8x8xbf16>, vector<4x8x8xf32> -> vector<4x8x8xf32>
    "tpu.trace_stop"() : () -> ()
    %103 = tpu.transpose %102, [1, 0, 2] : vector<4x8x8xf32> -> vector<8x4x8xf32>
    %104 = vector.shape_cast %103 : vector<8x4x8xf32> to vector<8x32xf32>
    %105 = arith.truncf %104 : vector<8x32xf32> to vector<8x32xbf16>
    %c0_29 = arith.constant 0 : index
    %c0_30 = arith.constant 0 : index
    %106 = vector.load %arg7[%c0_29, %c0_30] : memref<32x32xbf16, #tpu.memory_space<vmem>>, vector<32x32xbf16>
    %cst_31 = arith.constant dense<0.000000e+00> : vector<8x32xf32>
    %107 = tpu.matmul %105, %106, %cst_31 {dimension_numbers = #tpu.dot_dimension_numbers<[1], [0], [0], [1], [0, 0, 1, 1], [], []>} : vector<8x32xbf16>, vector<32x32xbf16>, vector<8x32xf32> -> vector<8x32xf32>
    %c0_32 = arith.constant 0 : index
    %c0_33 = arith.constant 0 : index
    %108 = vector.load %arg8[%c0_32, %c0_33] : memref<1x32xf32, #tpu.memory_space<vmem>>, vector<1x32xf32>
    %109 = vector.broadcast %108 : vector<1x32xf32> to vector<8x32xf32>
    %110 = arith.addf %107, %109 : vector<8x32xf32>
    %111 = arith.addf %10, %110 : vector<8x32xf32>
    %c0_34 = arith.constant 0 : index
    %c0_35 = arith.constant 0 : index
    %112 = vector.load %arg9[%c0_34, %c0_35] : memref<1x32xf32, #tpu.memory_space<vmem>>, vector<1x32xf32>
    %c0_36 = arith.constant 0 : index
    %c0_37 = arith.constant 0 : index
    %113 = vector.load %arg10[%c0_36, %c0_37] : memref<1x32xf32, #tpu.memory_space<vmem>>, vector<1x32xf32>
    %cst_38 = arith.constant dense<0.000000e+00> : vector<8xf32>
    %114 = vector.multi_reduction <add>, %111, %cst_38 [1] : vector<8x32xf32> to vector<8xf32>
    %115 = vector.shape_cast %114 : vector<8xf32> to vector<8x1xf32>
    %cst_39 = arith.constant 3.200000e+01 : f32
    %116 = vector.broadcast %cst_39 : f32 to vector<8x1xf32>
    %117 = arith.divf %115, %116 : vector<8x1xf32>
    %118 = vector.broadcast %117 : vector<8x1xf32> to vector<8x32xf32>
    %119 = arith.subf %111, %118 : vector<8x32xf32>
    %120 = arith.mulf %119, %119 : vector<8x32xf32>
    %cst_40 = arith.constant dense<0.000000e+00> : vector<8xf32>
    %121 = vector.multi_reduction <add>, %120, %cst_40 [1] : vector<8x32xf32> to vector<8xf32>
    %122 = vector.shape_cast %121 : vector<8xf32> to vector<8x1xf32>
    %cst_41 = arith.constant 3.200000e+01 : f32
    %123 = vector.broadcast %cst_41 : f32 to vector<8x1xf32>
    %124 = arith.divf %122, %123 : vector<8x1xf32>
    %125 = vector.broadcast %117 : vector<8x1xf32> to vector<8x32xf32>
    %126 = arith.subf %111, %125 : vector<8x32xf32>
    %cst_42 = arith.constant 9.99999974E-6 : f32
    %127 = vector.broadcast %cst_42 : f32 to vector<8x1xf32>
    %128 = arith.addf %124, %127 : vector<8x1xf32>
    %129 = math.rsqrt %128 : vector<8x1xf32>
    %130 = vector.broadcast %129 : vector<8x1xf32> to vector<8x32xf32>
    %131 = arith.mulf %126, %130 : vector<8x32xf32>
    %132 = vector.broadcast %112 : vector<1x32xf32> to vector<8x32xf32>
    %133 = arith.mulf %131, %132 : vector<8x32xf32>
    %134 = vector.broadcast %113 : vector<1x32xf32> to vector<8x32xf32>
    %135 = arith.addf %133, %134 : vector<8x32xf32>
    %136 = arith.truncf %135 : vector<8x32xf32> to vector<8x32xbf16>
    %c0_43 = arith.constant 0 : index
    %c0_44 = arith.constant 0 : index
    %137 = vector.load %arg11[%c0_43, %c0_44] : memref<32x128xbf16, #tpu.memory_space<vmem>>, vector<32x128xbf16>
    %cst_45 = arith.constant dense<0.000000e+00> : vector<8x128xf32>
    %138 = tpu.matmul %136, %137, %cst_45 {dimension_numbers = #tpu.dot_dimension_numbers<[1], [0], [0], [1], [0, 0, 1, 1], [], []>} : vector<8x32xbf16>, vector<32x128xbf16>, vector<8x128xf32> -> vector<8x128xf32>
    %c0_46 = arith.constant 0 : index
    %c0_47 = arith.constant 0 : index
    %139 = vector.load %arg12[%c0_46, %c0_47] : memref<1x128xf32, #tpu.memory_space<vmem>>, vector<1x128xf32>
    %140 = vector.broadcast %139 : vector<1x128xf32> to vector<8x128xf32>
    %141 = arith.addf %138, %140 : vector<8x128xf32>
    %cst_48 = arith.constant 5.000000e-01 : f32
    %142 = vector.broadcast %cst_48 : f32 to vector<8x128xf32>
    %143 = arith.mulf %142, %141 : vector<8x128xf32>
    %cst_49 = arith.constant 4.471500e-02 : f32
    %144 = vector.broadcast %cst_49 : f32 to vector<8x128xf32>
    %145 = arith.mulf %144, %141 : vector<8x128xf32>
    %146 = arith.mulf %145, %141 : vector<8x128xf32>
    %147 = arith.mulf %146, %141 : vector<8x128xf32>
    %148 = arith.addf %141, %147 : vector<8x128xf32>
    %cst_50 = arith.constant 0.797884583 : f32
    %149 = vector.broadcast %cst_50 : f32 to vector<8x128xf32>
    %150 = arith.mulf %149, %148 : vector<8x128xf32>
    %151 = math.tanh %150 : vector<8x128xf32>
    %cst_51 = arith.constant 1.000000e+00 : f32
    %152 = vector.broadcast %cst_51 : f32 to vector<8x128xf32>
    %153 = arith.addf %152, %151 : vector<8x128xf32>
    %154 = arith.mulf %143, %153 : vector<8x128xf32>
    %155 = arith.truncf %154 : vector<8x128xf32> to vector<8x128xbf16>
    %c0_52 = arith.constant 0 : index
    %c0_53 = arith.constant 0 : index
    %156 = vector.load %arg13[%c0_52, %c0_53] : memref<128x32xbf16, #tpu.memory_space<vmem>>, vector<128x32xbf16>
    %cst_54 = arith.constant dense<0.000000e+00> : vector<8x32xf32>
    %157 = tpu.matmul %155, %156, %cst_54 {dimension_numbers = #tpu.dot_dimension_numbers<[1], [0], [0], [1], [0, 0, 1, 1], [], []>} : vector<8x128xbf16>, vector<128x32xbf16>, vector<8x32xf32> -> vector<8x32xf32>
    %c0_55 = arith.constant 0 : index
    %c0_56 = arith.constant 0 : index
    %158 = vector.load %arg14[%c0_55, %c0_56] : memref<1x32xf32, #tpu.memory_space<vmem>>, vector<1x32xf32>
    %159 = vector.broadcast %158 : vector<1x32xf32> to vector<8x32xf32>
    %160 = arith.addf %157, %159 : vector<8x32xf32>
    %161 = arith.addf %111, %160 : vector<8x32xf32>
    %c0_57 = arith.constant 0 : index
    %c0_58 = arith.constant 0 : index
    %c0_59 = arith.constant 0 : index
    %162 = vector.load %arg15[%c0_57, %c0_58, %c0_59] : memref<1x8x32xf32, #tpu.memory_space<vmem>>, vector<1x8x32xf32>
    %163 = vector.shape_cast %162 : vector<1x8x32xf32> to vector<8x32xf32>
    %164 = vector.shape_cast %161 : vector<8x32xf32> to vector<1x8x32xf32>
    tpu.vector_store %arg15[%c0_57, %c0_58, %c0_59], %164 {strides = array<i32>} : memref<1x8x32xf32, #tpu.memory_space<vmem>>, vector<1x8x32xf32>,
    return
  }
  func.func @transform_0(%arg0: i32, %arg1: i32) -> (i32, i32, i32) {
    %c0_i32 = arith.constant 0 : i32
    %c0_i32_0 = arith.constant 0 : i32
    %c0_i32_1 = arith.constant 0 : i32
    return %arg0, %c0_i32, %c0_i32_0 : i32, i32, i32
  }
  func.func @transform_1(%arg0: i32, %arg1: i32) -> (i32, i32) {
    %c0_i32 = arith.constant 0 : i32
    %c0_i32_0 = arith.constant 0 : i32
    %c0_i32_1 = arith.constant 0 : i32
    return %c0_i32, %c0_i32_0 : i32, i32
  }
  func.func @transform_2(%arg0: i32, %arg1: i32) -> (i32, i32) {
    %c0_i32 = arith.constant 0 : i32
    %c0_i32_0 = arith.constant 0 : i32
    %c0_i32_1 = arith.constant 0 : i32
    return %c0_i32, %c0_i32_0 : i32, i32
  }
  func.func @transform_3(%arg0: i32, %arg1: i32) -> (i32, i32) {
    %c0_i32 = arith.constant 0 : i32
    %c0_i32_0 = arith.constant 0 : i32
    %c0_i32_1 = arith.constant 0 : i32
    return %c0_i32, %c0_i32_0 : i32, i32
  }
  func.func @transform_4(%arg0: i32, %arg1: i32) -> (i32, i32) {
    %c0_i32 = arith.constant 0 : i32
    %c0_i32_0 = arith.constant 0 : i32
    %c0_i32_1 = arith.constant 0 : i32
    return %c0_i32, %c0_i32_0 : i32, i32
  }
  func.func @transform_5(%arg0: i32, %arg1: i32) -> (i32, i32) {
    %c0_i32 = arith.constant 0 : i32
    %c0_i32_0 = arith.constant 0 : i32
    %c0_i32_1 = arith.constant 0 : i32
    return %c0_i32, %c0_i32_0 : i32, i32
  }
  func.func @transform_6(%arg0: i32, %arg1: i32) -> (i32, i32) {
    %c0_i32 = arith.constant 0 : i32
    %c0_i32_0 = arith.constant 0 : i32
    %c0_i32_1 = arith.constant 0 : i32
    return %c0_i32, %c0_i32_0 : i32, i32
  }
  func.func @transform_7(%arg0: i32, %arg1: i32) -> (i32, i32) {
    %c0_i32 = arith.constant 0 : i32
    %c0_i32_0 = arith.constant 0 : i32
    %c0_i32_1 = arith.constant 0 : i32
    return %c0_i32, %c0_i32_0 : i32, i32
  }
  func.func @transform_8(%arg0: i32, %arg1: i32) -> (i32, i32) {
    %c0_i32 = arith.constant 0 : i32
    %c0_i32_0 = arith.constant 0 : i32
    %c0_i32_1 = arith.constant 0 : i32
    return %c0_i32, %c0_i32_0 : i32, i32
  }
  func.func @transform_9(%arg0: i32, %arg1: i32) -> (i32, i32) {
    %c0_i32 = arith.constant 0 : i32
    %c0_i32_0 = arith.constant 0 : i32
    %c0_i32_1 = arith.constant 0 : i32
    return %c0_i32, %c0_i32_0 : i32, i32
  }
  func.func @transform_10(%arg0: i32, %arg1: i32) -> (i32, i32) {
    %c0_i32 = arith.constant 0 : i32
    %c0_i32_0 = arith.constant 0 : i32
    %c0_i32_1 = arith.constant 0 : i32
    return %c0_i32, %c0_i32_0 : i32, i32
  }
  func.func @transform_11(%arg0: i32, %arg1: i32) -> (i32, i32) {
    %c0_i32 = arith.constant 0 : i32
    %c0_i32_0 = arith.constant 0 : i32
    %c0_i32_1 = arith.constant 0 : i32
    return %c0_i32, %c0_i32_0 : i32, i32
  }
  func.func @transform_12(%arg0: i32, %arg1: i32) -> (i32, i32) {
    %c0_i32 = arith.constant 0 : i32
    %c0_i32_0 = arith.constant 0 : i32
    %c0_i32_1 = arith.constant 0 : i32
    return %c0_i32, %c0_i32_0 : i32, i32
  }
  func.func @transform_13(%arg0: i32, %arg1: i32) -> (i32, i32, i32) {
    %c0_i32 = arith.constant 0 : i32
    %c0_i32_0 = arith.constant 0 : i32
    return %arg0, %arg1, %c0_i32 : i32, i32, i32
  }
}

</mosaic_0001>

<llo_original>
// kernel: tpu_custom_call.1
$region0: #{tpu_custom_call.1}
  #allocation0 [shape = 'u32[]', space=smem, size = 0x4, offset = 0x4, fixed_abs, tag = 'smem constant byte address 0x4 - core index']
  #allocation1 [shape = 'u32[144,128]{1,0:T(1,128)}', space=vmem, size = 0x12000, scoped, tag = 'internal scratch']
  %s0 = inlined_call_operand.vmem [shape: f32[2,8,32], index: 0, kind: input, shape index: {}]
  %s1 = inlined_call_operand.vmem [shape: f32[1,32], index: 1, kind: input, shape index: {}]
  %s2 = inlined_call_operand.vmem [shape: f32[1,32], index: 2, kind: input, shape index: {}]
  %s3 = inlined_call_operand.vmem [shape: bf16[32,96], index: 3, kind: input, shape index: {}]
  %s4 = inlined_call_operand.vmem [shape: f32[1,96], index: 4, kind: input, shape index: {}]
  %s5 = inlined_call_operand.vmem [shape: bf16[32,32], index: 5, kind: input, shape index: {}]
  %s6 = inlined_call_operand.vmem [shape: f32[1,32], index: 6, kind: input, shape index: {}]
  %s7 = inlined_call_operand.vmem [shape: f32[1,32], index: 7, kind: input, shape index: {}]
  %s8 = inlined_call_operand.vmem [shape: f32[1,32], index: 8, kind: input, shape index: {}]
  %s9 = inlined_call_operand.vmem [shape: bf16[32,128], index: 9, kind: input, shape index: {}]
  %s10 = inlined_call_operand.vmem [shape: f32[1,128], index: 10, kind: input, shape index: {}]
  %s11 = inlined_call_operand.vmem [shape: bf16[128,32], index: 11, kind: input, shape index: {}]
  %s12 = inlined_call_operand.vmem [shape: f32[1,32], index: 12, kind: input, shape index: {}]
  %s13 = inlined_call_operand.hbm [shape: f32[2,8,32], index: 13, kind: output, shape index: {}]
  %s14 = sld [smem:[#allocation0]]
  $region85: #{tpu_custom_call.1} parent=0
    _
  %s16 = ssub.s32 1, %s14
  %s17 = scalar_select 0, %s16, %s14
  $region1: #{tpu_custom_call.1} parent=0
    #allocation2 [shape = 'u8[8192]{0}', space=vmem, size = 0x2000, scoped, tag = 'output window, operand 0']
    #allocation3 [shape = 's32[2]{0}', space=sflag, size = 0x8, scoped, tag = 'scoped memory for tpu_custom_call.1']
    %18 = vsyncpa [#allocation3], 0
    %s19 = scalar_lea.sflag [#allocation3], 1
    %20 = vsyncpa %s19, 0
    loop: start=0, step=1, limit=4
    $region2: #{tpu_custom_call.1} parent=1 // loop_pre_header
      _
    $region3: #{tpu_custom_call.1} parent=1 // loop_header
      %s22 = sphi 0, %s26
      %p23 = scmp.ge.s32.totalorder %s22, 4
      %s29 = sphi 0, %s41
      %s30 = sphi 0, %s37
      %s31 = sphi 0, %s29
      %s32 = sphi 0, %s30
      %s33 = sphi 0, %s31
      %s34 = sphi 0, %s32
      %s44 = sphi 0, %s46
      %s47 = sphi 0, %s44
      %s48 = sphi 0, %s47
      %s64 = sphi 0, %s48
      %s68 = sphi 0, %s68
      %s70 = sphi 0, %s68
      %s71 = sphi 0, %s70
      %s85 = sphi 0, %s71
      %s89 = sphi 0, %s89
      %s91 = sphi 0, %s89
      %s92 = sphi 0, %s91
      %s106 = sphi 0, %s92
      %s110 = sphi 0, %s110
      %s112 = sphi 0, %s110
      %s113 = sphi 0, %s112
      %s127 = sphi 0, %s113
      %s131 = sphi 0, %s131
      %s133 = sphi 0, %s131
      %s134 = sphi 0, %s133
      %s148 = sphi 0, %s134
      %s152 = sphi 0, %s152
      %s154 = sphi 0, %s152
      %s155 = sphi 0, %s154
      %s169 = sphi 0, %s155
      %s173 = sphi 0, %s173
      %s175 = sphi 0, %s173
      %s176 = sphi 0, %s175
      %s190 = sphi 0, %s176
      %s194 = sphi 0, %s194
      %s196 = sphi 0, %s194
      %s197 = sphi 0, %s196
      %s211 = sphi 0, %s197
      %s215 = sphi 0, %s215
      %s217 = sphi 0, %s215
      %s218 = sphi 0, %s217
      %s232 = sphi 0, %s218
      %s236 = sphi 0, %s236
      %s238 = sphi 0, %s236
      %s239 = sphi 0, %s238
      %s253 = sphi 0, %s239
      %s257 = sphi 0, %s257
      %s259 = sphi 0, %s257
      %s260 = sphi 0, %s259
      %s274 = sphi 0, %s260
      %s278 = sphi 0, %s278
      %s280 = sphi 0, %s278
      %s281 = sphi 0, %s280
      %s295 = sphi 0, %s281
      %s299 = sphi 0, %s299
      %s301 = sphi 0, %s299
      %s302 = sphi 0, %s301
      %s316 = sphi 0, %s302
      %s324 = sphi 0, %s326
      %s327 = sphi 0, %s324
      %s328 = sphi 0, %s327
      %s344 = sphi 0, %s328
    $region4: #{tpu_custom_call.1} parent=1 // loop_header_branch
      %25 = sbr.rel (%p23) target = $region8
    $region5: #{tpu_custom_call.1} parent=1 // loop_body
      %s27 = ssub.s32 %s22, 1
      %s28 = ssub.s32 %s22, 2
      %s35 = sadd.s32 1, %s30
      %p36 = scmp.ge.s32.totalorder %s35, 1
      %s37 = scalar_select %p36, 0, %s35
      %s38 = sadd.s32 1, %s29
      %s39 = scalar_select %p36, %s38, %s29
      %p40 = scmp.ge.s32.totalorder %s39, 2
      %s41 = scalar_select %p40, 0, %s39
      %s42 = ssub.s32 %s29, %s41
      %p43 = scmp.eq.s32.totalorder %s42, 0
      %s45 = sadd.s32 %s44, 1
      %s46 = scalar_select %p43, %s44, %s45
      %p49 = pneg %p43
      %p50 = scmp.eq.s32.totalorder %s22, 1
      %p51 = por %p49, %p50
      %p52 = scmp.ne.s32.totalorder %s44, %s47
      %p53 = scmp.eq.s32.totalorder %s22, 0
      %p54 = por %p52, %p53
      %p55 = scmp.ne.s32.totalorder %s44, %s47
      %p56 = scmp.eq.s32.totalorder %s27, 1
      %p57 = por %p55, %p56
      %p58 = scmp.ne.s32.totalorder %s47, %s48
      %p59 = scmp.eq.s32.totalorder %s27, 0
      %p60 = por %p58, %p59
      %p61 = scmp.ne.s32.totalorder %s47, %s48
      %p62 = scmp.eq.s32.totalorder %s28, 1
      %p63 = por %p61, %p62
      %p65 = scmp.ne.s32.totalorder %s48, %s64
      %p66 = scmp.eq.s32.totalorder %s28, 0
      %p67 = por %p65, %p66
      %s69 = sadd.s32 %s68, 1
      %p72 = scmp.eq.s32.totalorder %s22, 1
      %p73 = scmp.ne.s32.totalorder %s68, %s70
      %p74 = scmp.eq.s32.totalorder %s22, 0
      %p75 = por %p73, %p74
      %p76 = scmp.ne.s32.totalorder %s68, %s70
      %p77 = scmp.eq.s32.totalorder %s27, 1
      %p78 = por %p76, %p77
      %p79 = scmp.ne.s32.totalorder %s70, %s71
      %p80 = scmp.eq.s32.totalorder %s27, 0
      %p81 = por %p79, %p80
      %p82 = scmp.ne.s32.totalorder %s70, %s71
      %p83 = scmp.eq.s32.totalorder %s28, 1
      %p84 = por %p82, %p83
      %p86 = scmp.ne.s32.totalorder %s71, %s85
      %p87 = scmp.eq.s32.totalorder %s28, 0
      %p88 = por %p86, %p87
      %s90 = sadd.s32 %s89, 1
      %p93 = scmp.eq.s32.totalorder %s22, 1
      %p94 = scmp.ne.s32.totalorder %s89, %s91
      %p95 = scmp.eq.s32.totalorder %s22, 0
      %p96 = por %p94, %p95
      %p97 = scmp.ne.s32.totalorder %s89, %s91
      %p98 = scmp.eq.s32.totalorder %s27, 1
      %p99 = por %p97, %p98
      %p100 = scmp.ne.s32.totalorder %s91, %s92
      %p101 = scmp.eq.s32.totalorder %s27, 0
      %p102 = por %p100, %p101
      %p103 = scmp.ne.s32.totalorder %s91, %s92
      %p104 = scmp.eq.s32.totalorder %s28, 1
      %p105 = por %p103, %p104
      %p107 = scmp.ne.s32.totalorder %s92, %s106
      %p108 = scmp.eq.s32.totalorder %s28, 0
      %p109 = por %p107, %p108
      %s111 = sadd.s32 %s110, 1
      %p114 = scmp.eq.s32.totalorder %s22, 1
      %p115 = scmp.ne.s32.totalorder %s110, %s112
      %p116 = scmp.eq.s32.totalorder %s22, 0
      %p117 = por %p115, %p116
      %p118 = scmp.ne.s32.totalorder %s110, %s112
      %p119 = scmp.eq.s32.totalorder %s27, 1
      %p120 = por %p118, %p119
      %p121 = scmp.ne.s32.totalorder %s112, %s113
      %p122 = scmp.eq.s32.totalorder %s27, 0
      %p123 = por %p121, %p122
      %p124 = scmp.ne.s32.totalorder %s112, %s113
      %p125 = scmp.eq.s32.totalorder %s28, 1
      %p126 = por %p124, %p125
      %p128 = scmp.ne.s32.totalorder %s113, %s127
      %p129 = scmp.eq.s32.totalorder %s28, 0
      %p130 = por %p128, %p129
      %s132 = sadd.s32 %s131, 1
      %p135 = scmp.eq.s32.totalorder %s22, 1
      %p136 = scmp.ne.s32.totalorder %s131, %s133
      %p137 = scmp.eq.s32.totalorder %s22, 0
      %p138 = por %p136, %p137
      %p139 = scmp.ne.s32.totalorder %s131, %s133
      %p140 = scmp.eq.s32.totalorder %s27, 1
      %p141 = por %p139, %p140
      %p142 = scmp.ne.s32.totalorder %s133, %s134
      %p143 = scmp.eq.s32.totalorder %s27, 0
      %p144 = por %p142, %p143
      %p145 = scmp.ne.s32.totalorder %s133, %s134
      %p146 = scmp.eq.s32.totalorder %s28, 1
      %p147 = por %p145, %p146
      %p149 = scmp.ne.s32.totalorder %s134, %s148
      %p150 = scmp.eq.s32.totalorder %s28, 0
      %p151 = por %p149, %p150
      %s153 = sadd.s32 %s152, 1
      %p156 = scmp.eq.s32.totalorder %s22, 1
      %p157 = scmp.ne.s32.totalorder %s152, %s154
      %p158 = scmp.eq.s32.totalorder %s22, 0
      %p159 = por %p157, %p158
      %p160 = scmp.ne.s32.totalorder %s152, %s154
      %p161 = scmp.eq.s32.totalorder %s27, 1
      %p162 = por %p160, %p161
      %p163 = scmp.ne.s32.totalorder %s154, %s155
      %p164 = scmp.eq.s32.totalorder %s27, 0
      %p165 = por %p163, %p164
      %p166 = scmp.ne.s32.totalorder %s154, %s155
      %p167 = scmp.eq.s32.totalorder %s28, 1
      %p168 = por %p166, %p167
      %p170 = scmp.ne.s32.totalorder %s155, %s169
      %p171 = scmp.eq.s32.totalorder %s28, 0
      %p172 = por %p170, %p171
      %s174 = sadd.s32 %s173, 1
      %p177 = scmp.eq.s32.totalorder %s22, 1
      %p178 = scmp.ne.s32.totalorder %s173, %s175
      %p179 = scmp.eq.s32.totalorder %s22, 0
      %p180 = por %p178, %p179
      %p181 = scmp.ne.s32.totalorder %s173, %s175
      %p182 = scmp.eq.s32.totalorder %s27, 1
      %p183 = por %p181, %p182
      %p184 = scmp.ne.s32.totalorder %s175, %s176
      %p185 = scmp.eq.s32.totalorder %s27, 0
      %p186 = por %p184, %p185
      %p187 = scmp.ne.s32.totalorder %s175, %s176
      %p188 = scmp.eq.s32.totalorder %s28, 1
      %p189 = por %p187, %p188
      %p191 = scmp.ne.s32.totalorder %s176, %s190
      %p192 = scmp.eq.s32.totalorder %s28, 0
      %p193 = por %p191, %p192
      %s195 = sadd.s32 %s194, 1
      %p198 = scmp.eq.s32.totalorder %s22, 1
      %p199 = scmp.ne.s32.totalorder %s194, %s196
      %p200 = scmp.eq.s32.totalorder %s22, 0
      %p201 = por %p199, %p200
      %p202 = scmp.ne.s32.totalorder %s194, %s196
      %p203 = scmp.eq.s32.totalorder %s27, 1
      %p204 = por %p202, %p203
      %p205 = scmp.ne.s32.totalorder %s196, %s197
      %p206 = scmp.eq.s32.totalorder %s27, 0
      %p207 = por %p205, %p206
      %p208 = scmp.ne.s32.totalorder %s196, %s197
      %p209 = scmp.eq.s32.totalorder %s28, 1
      %p210 = por %p208, %p209
      %p212 = scmp.ne.s32.totalorder %s197, %s211
      %p213 = scmp.eq.s32.totalorder %s28, 0
      %p214 = por %p212, %p213
      %s216 = sadd.s32 %s215, 1
      %p219 = scmp.eq.s32.totalorder %s22, 1
      %p220 = scmp.ne.s32.totalorder %s215, %s217
      %p221 = scmp.eq.s32.totalorder %s22, 0
      %p222 = por %p220, %p221
      %p223 = scmp.ne.s32.totalorder %s215, %s217
      %p224 = scmp.eq.s32.totalorder %s27, 1
      %p225 = por %p223, %p224
      %p226 = scmp.ne.s32.totalorder %s217, %s218
      %p227 = scmp.eq.s32.totalorder %s27, 0
      %p228 = por %p226, %p227
      %p229 = scmp.ne.s32.totalorder %s217, %s218
      %p230 = scmp.eq.s32.totalorder %s28, 1
      %p231 = por %p229, %p230
      %p233 = scmp.ne.s32.totalorder %s218, %s232
      %p234 = scmp.eq.s32.totalorder %s28, 0
      %p235 = por %p233, %p234
      %s237 = sadd.s32 %s236, 1
      %p240 = scmp.eq.s32.totalorder %s22, 1
      %p241 = scmp.ne.s32.totalorder %s236, %s238
      %p242 = scmp.eq.s32.totalorder %s22, 0
      %p243 = por %p241, %p242
      %p244 = scmp.ne.s32.totalorder %s236, %s238
      %p245 = scmp.eq.s32.totalorder %s27, 1
      %p246 = por %p244, %p245
      %p247 = scmp.ne.s32.totalorder %s238, %s239
      %p248 = scmp.eq.s32.totalorder %s27, 0
      %p249 = por %p247, %p248
      %p250 = scmp.ne.s32.totalorder %s238, %s239
      %p251 = scmp.eq.s32.totalorder %s28, 1
      %p252 = por %p250, %p251
      %p254 = scmp.ne.s32.totalorder %s239, %s253
      %p255 = scmp.eq.s32.totalorder %s28, 0
      %p256 = por %p254, %p255
      %s258 = sadd.s32 %s257, 1
      %p261 = scmp.eq.s32.totalorder %s22, 1
      %p262 = scmp.ne.s32.totalorder %s257, %s259
      %p263 = scmp.eq.s32.totalorder %s22, 0
      %p264 = por %p262, %p263
      %p265 = scmp.ne.s32.totalorder %s257, %s259
      %p266 = scmp.eq.s32.totalorder %s27, 1
      %p267 = por %p265, %p266
      %p268 = scmp.ne.s32.totalorder %s259, %s260
      %p269 = scmp.eq.s32.totalorder %s27, 0
      %p270 = por %p268, %p269
      %p271 = scmp.ne.s32.totalorder %s259, %s260
      %p272 = scmp.eq.s32.totalorder %s28, 1
      %p273 = por %p271, %p272
      %p275 = scmp.ne.s32.totalorder %s260, %s274
      %p276 = scmp.eq.s32.totalorder %s28, 0
      %p277 = por %p275, %p276
      %s279 = sadd.s32 %s278, 1
      %p282 = scmp.eq.s32.totalorder %s22, 1
      %p283 = scmp.ne.s32.totalorder %s278, %s280
      %p284 = scmp.eq.s32.totalorder %s22, 0
      %p285 = por %p283, %p284
      %p286 = scmp.ne.s32.totalorder %s278, %s280
      %p287 = scmp.eq.s32.totalorder %s27, 1
      %p288 = por %p286, %p287
      %p289 = scmp.ne.s32.totalorder %s280, %s281
      %p290 = scmp.eq.s32.totalorder %s27, 0
      %p291 = por %p289, %p290
      %p292 = scmp.ne.s32.totalorder %s280, %s281
      %p293 = scmp.eq.s32.totalorder %s28, 1
      %p294 = por %p292, %p293
      %p296 = scmp.ne.s32.totalorder %s281, %s295
      %p297 = scmp.eq.s32.totalorder %s28, 0
      %p298 = por %p296, %p297
      %s300 = sadd.s32 %s299, 1
      %p303 = scmp.eq.s32.totalorder %s22, 1
      %p304 = scmp.ne.s32.totalorder %s299, %s301
      %p305 = scmp.eq.s32.totalorder %s22, 0
      %p306 = por %p304, %p305
      %p307 = scmp.ne.s32.totalorder %s299, %s301
      %p308 = scmp.eq.s32.totalorder %s27, 1
      %p309 = por %p307, %p308
      %p310 = scmp.ne.s32.totalorder %s301, %s302
      %p311 = scmp.eq.s32.totalorder %s27, 0
      %p312 = por %p310, %p311
      %p313 = scmp.ne.s32.totalorder %s301, %s302
      %p314 = scmp.eq.s32.totalorder %s28, 1
      %p315 = por %p313, %p314
      %p317 = scmp.ne.s32.totalorder %s302, %s316
      %p318 = scmp.eq.s32.totalorder %s28, 0
      %p319 = por %p317, %p318
      %s320 = ssub.s32 %s29, %s41
      %s321 = ssub.s32 %s30, %s37
      %s322 = sor.u32 %s320, %s321
      %p323 = scmp.eq.s32.totalorder %s322, 0
      %s325 = sadd.s32 %s324, 1
      %s326 = scalar_select %p323, %s324, %s325
      %p329 = pneg %p323
      %p330 = scmp.eq.s32.totalorder %s22, 1
      %p331 = por %p329, %p330
      %p332 = scmp.ne.s32.totalorder %s324, %s327
      %p333 = scmp.eq.s32.totalorder %s22, 0
      %p334 = por %p332, %p333
      %p335 = scmp.ne.s32.totalorder %s324, %s327
      %p336 = scmp.eq.s32.totalorder %s27, 1
      %p337 = por %p335, %p336
      %p338 = scmp.ne.s32.totalorder %s327, %s328
      %p339 = scmp.eq.s32.totalorder %s27, 0
      %p340 = por %p338, %p339
      %p341 = scmp.ne.s32.totalorder %s327, %s328
      %p342 = scmp.eq.s32.totalorder %s28, 1
      %p343 = por %p341, %p342
      %p345 = scmp.ne.s32.totalorder %s328, %s344
      %p346 = scmp.eq.s32.totalorder %s28, 0
      %p347 = por %p345, %p346
      %p348 = scmp.le.s32.totalorder 1, %s22
      %p349 = scmp.lt.s32.totalorder %s22, 3
      %p350 = pnand %p348, %p349
      %p351 = pneg %p350
      // Predicated region
      $region9: #{tpu_custom_call.1} parent=5 // pred_check
        _
      $region10: #{tpu_custom_call.1} parent=5 // pred_check_branch
        %353 = sbr.rel (%p350) target = $region12
      $region11: #{tpu_custom_call.1} parent=5 // pred_region
        %s354 = ssub.s32 %s22, 1
        // Predicated region
        $region13: #{tpu_custom_call.1} parent=11 // pred_check
          %p355 = pneg %p81
        $region14: #{tpu_custom_call.1} parent=11 // pred_check_branch
          %357 = sbr.rel (%p355) target = $region16
        $region15: #{tpu_custom_call.1} parent=11 // pred_region
          _
        $region16: #{tpu_custom_call.1} parent=11 // pred_fallthru
          _
        // Predicated region
        $region17: #{tpu_custom_call.1} parent=11 // pred_check
          %p358 = pneg %p102
        $region18: #{tpu_custom_call.1} parent=11 // pred_check_branch
          %360 = sbr.rel (%p358) target = $region20
        $region19: #{tpu_custom_call.1} parent=11 // pred_region
          _
        $region20: #{tpu_custom_call.1} parent=11 // pred_fallthru
          _
        // Predicated region
        $region21: #{tpu_custom_call.1} parent=11 // pred_check
          %p361 = pneg %p123
        $region22: #{tpu_custom_call.1} parent=11 // pred_check_branch
          %363 = sbr.rel (%p361) target = $region24
        $region23: #{tpu_custom_call.1} parent=11 // pred_region
          _
        $region24: #{tpu_custom_call.1} parent=11 // pred_fallthru
          _
        // Predicated region
        $region25: #{tpu_custom_call.1} parent=11 // pred_check
          %p364 = pneg %p144
        $region26: #{tpu_custom_call.1} parent=11 // pred_check_branch
          %366 = sbr.rel (%p364) target = $region28
        $region27: #{tpu_custom_call.1} parent=11 // pred_region
          _
        $region28: #{tpu_custom_call.1} parent=11 // pred_fallthru
          _
        // Predicated region
        $region29: #{tpu_custom_call.1} parent=11 // pred_check
          %p367 = pneg %p165
        $region30: #{tpu_custom_call.1} parent=11 // pred_check_branch
          %369 = sbr.rel (%p367) target = $region32
        $region31: #{tpu_custom_call.1} parent=11 // pred_region
          _
        $region32: #{tpu_custom_call.1} parent=11 // pred_fallthru
          _
        // Predicated region
        $region33: #{tpu_custom_call.1} parent=11 // pred_check
          %p370 = pneg %p186
        $region34: #{tpu_custom_call.1} parent=11 // pred_check_branch
          %372 = sbr.rel (%p370) target = $region36
        $region35: #{tpu_custom_call.1} parent=11 // pred_region
          _
        $region36: #{tpu_custom_call.1} parent=11 // pred_fallthru
          _
        // Predicated region
        $region37: #{tpu_custom_call.1} parent=11 // pred_check
          %p373 = pneg %p207
        $region38: #{tpu_custom_call.1} parent=11 // pred_check_branch
          %375 = sbr.rel (%p373) target = $region40
        $region39: #{tpu_custom_call.1} parent=11 // pred_region
          _
        $region40: #{tpu_custom_call.1} parent=11 // pred_fallthru
          _
        // Predicated region
        $region41: #{tpu_custom_call.1} parent=11 // pred_check
          %p376 = pneg %p228
        $region42: #{tpu_custom_call.1} parent=11 // pred_check_branch
          %378 = sbr.rel (%p376) target = $region44
        $region43: #{tpu_custom_call.1} parent=11 // pred_region
          _
        $region44: #{tpu_custom_call.1} parent=11 // pred_fallthru
          _
        // Predicated region
        $region45: #{tpu_custom_call.1} parent=11 // pred_check
          %p379 = pneg %p249
        $region46: #{tpu_custom_call.1} parent=11 // pred_check_branch
          %381 = sbr.rel (%p379) target = $region48
        $region47: #{tpu_custom_call.1} parent=11 // pred_region
          _
        $region48: #{tpu_custom_call.1} parent=11 // pred_fallthru
          _
        // Predicated region
        $region49: #{tpu_custom_call.1} parent=11 // pred_check
          %p382 = pneg %p270
        $region50: #{tpu_custom_call.1} parent=11 // pred_check_branch
          %384 = sbr.rel (%p382) target = $region52
        $region51: #{tpu_custom_call.1} parent=11 // pred_region
          _
        $region52: #{tpu_custom_call.1} parent=11 // pred_fallthru
          _
        // Predicated region
        $region53: #{tpu_custom_call.1} parent=11 // pred_check
          %p385 = pneg %p291
        $region54: #{tpu_custom_call.1} parent=11 // pred_check_branch
          %387 = sbr.rel (%p385) target = $region56
        $region55: #{tpu_custom_call.1} parent=11 // pred_region
          _
        $region56: #{tpu_custom_call.1} parent=11 // pred_fallthru
          _
        // Predicated region
        $region57: #{tpu_custom_call.1} parent=11 // pred_check
          %p388 = pneg %p312
        $region58: #{tpu_custom_call.1} parent=11 // pred_check_branch
          %390 = sbr.rel (%p388) target = $region60
        $region59: #{tpu_custom_call.1} parent=11 // pred_region
          _
        $region60: #{tpu_custom_call.1} parent=11 // pred_fallthru
          _
      $region12: #{tpu_custom_call.1} parent=5 // pred_fallthru
        _
      %p391 = scmp.lt.s32.totalorder %s22, 2
      // Predicated region
      $region61: #{tpu_custom_call.1} parent=5 // pred_check
        %p392 = pneg %p391
      $region62: #{tpu_custom_call.1} parent=5 // pred_check_branch
        %394 = sbr.rel (%p392) target = $region64
      $region63: #{tpu_custom_call.1} parent=5 // pred_region
        // Predicated region
        $region65: #{tpu_custom_call.1} parent=63 // pred_check
          %p395 = pneg %p54
        $region66: #{tpu_custom_call.1} parent=63 // pred_check_branch
          %397 = sbr.rel (%p395) target = $region68
        $region67: #{tpu_custom_call.1} parent=63 // pred_region
          %p398 = scmp.lt.s32.totalorder %s29, 1
          %s399 = scalar_select %p398, %s29, 1
          %s400 = smul.addr %s399, 8
          %s401 = scalar_lea.vmem %s0, %s400
        $region68: #{tpu_custom_call.1} parent=63 // pred_fallthru
          _
      $region64: #{tpu_custom_call.1} parent=5 // pred_fallthru
        _
      %p402 = scmp.le.s32.totalorder 1, %s22
      %p403 = scmp.lt.s32.totalorder %s22, 3
      %p404 = pnand %p402, %p403
      %p405 = pneg %p404
      // Predicated region
      $region69: #{tpu_custom_call.1} parent=5 // pred_check
        _
      $region70: #{tpu_custom_call.1} parent=5 // pred_check_branch
        %407 = sbr.rel (%p404) target = $region72
      $region71: #{tpu_custom_call.1} parent=5 // pred_region
        %s408 = ssub.s32 %s22, 1
        %p409 = scmp.lt.s32.totalorder %s31, 1
        %s410 = scalar_select %p409, %s31, 1
        %s411 = smul.addr %s410, 8
        %s412 = scalar_lea.vmem %s0, %s411
        %p413 = pneg %p60
        %p414 = pneg %p57
        %p415 = pneg %p81
        %p416 = pneg %p78
        %p417 = pneg %p102
        %p418 = pneg %p99
        %p419 = pneg %p123
        %p420 = pneg %p120
        %p421 = pneg %p144
        %p422 = pneg %p141
        %p423 = pneg %p165
        %p424 = pneg %p162
        %p425 = pneg %p186
        %p426 = pneg %p183
        %p427 = pneg %p207
        %p428 = pneg %p204
        %p429 = pneg %p228
        %p430 = pneg %p225
        %p431 = pneg %p249
        %p432 = pneg %p246
        %p433 = pneg %p270
        %p434 = pneg %p267
        %p435 = pneg %p291
        %p436 = pneg %p288
        %p437 = pneg %p312
        %p438 = pneg %p309
        %p439 = pneg %p340
        %p440 = pneg %p337
        %s441 = sand.u32 %s327, 1
        %s442 = scalar_lea.sflag [#allocation3], %s441
        %s443 = sand.u32 %s327, 1
        %s444 = smul.addr %s443, 8
        %s445 = scalar_lea.vmem [#allocation2], %s444
        %p446 = scmp.lt.s32.totalorder %s31, 1
        %s447 = scalar_select %p446, %s31, 1
        %s448 = smul.addr %s447, 8
        %s449 = scalar_lea.vmem %s0, %s448
        %s451 = smul.u32 %s32, 8
        %v452 = vld [vmem:[%s1] sm:$0x1]
        %v453 = vld [vmem:[%s2] sm:$0x1]
        %v454 = vld [vmem:[%s4] sm:$0x1]
        %v455 = vld [vmem:[%s3] sm:$0xf]
        %v456 = vld [vmem:[%s3 + $0x4] sm:$0xf]
        %v457 = vld [vmem:[%s3 + $0x8] sm:$0xf]
        %v458 = vld [vmem:[%s3 + $0xc] sm:$0xf]
        %v459 = vld [vmem:[%s449] sm:$0xff]
        %s460 = scalar_lea.vmem %s449, %s451
        %v461 = vld [vmem:[%s460] sm:$0xff]
        %vm462 = vcmask 261120
        %v463 = vsel %vm462, %v459, 0.0
        %464 = vadd.xlane.f32.xlu0 %v463
        %v465 = vpop.xlane.xlu0 %464
        %v466 = vrcp.pop 32.0
        %v467 = vmul.f32 %v465, %v466
        %v468 = vsub.f32 %v459, %v467
        %v469 = vmul.f32 %v468, %v468
        %v470 = vsel %vm462, %v469, 0.0
        %471 = vadd.xlane.f32.xlu0 %v470
        %v472 = vpop.xlane.xlu0 %471
        %v473 = vmul.f32 %v472, %v466
        %v474 = vadd.f32 %v473, 1e-05
        %v475 = vrsqrt.pop %v474
        %v476 = vmul.f32 %v468, %v475
        %v478 = vlaneseq
        %v479 = vshrl.u32 %v478, 7
        %v480 = vsub.s32 0, %v479
        %v481 = vrot.slane %v452, %v480
        %v483 = vmul.f32 %v476, %v481
        %v485 = vlaneseq
        %v486 = vshrl.u32 %v485, 7
        %v487 = vsub.s32 0, %v486
        %v488 = vrot.slane %v453, %v487
        %v490 = vadd.f32 %v483, %v488
        %v491 = vpack.c.bf16 %v490, %v490
        %v493 = vlaneseq
        %v494 = vshrl.u32 %v493, 7
        %v495 = vsub.s32 0, %v494
        %v496 = vrot.slane %v454, %v495
        %v501 = vunpack.c.l.b16 %v455
        %v502 = vunpack.c.l.b16 %v456
        %v503 = vunpack.c.l.b16 %v457
        %v504 = vunpack.c.l.b16 %v458
        %v505 = vpack.c.b16 %v502, %v501
        %v506 = vpack.c.b16 %v504, %v503
        %507 = vrot.lane.b32.xlu0 %v505, 96
        %v508 = vpop.permute.xlu0 %507
        %509 = vrot.lane.b32.xlu0 %v506, 96
        %v510 = vpop.permute.xlu0 %509
        %513 = vrot.lane.b32.xlu0 %v496, 96
        %v514 = vpop.permute.xlu0 %513
        %v517 = vsel %vm462, %v491, 0
        %519 = vmatprep.subr.bf16.mxu0 0
        %520 = vmatpush1.bf16.msra.mxu0 0
        %521 = vmatprep.subr.bf16.mxu0 0
        %522 = vmatpush1.bf16.msra.mxu0 0
        %523 = vmatprep.subr.bf16.mxu0 0
        %524 = vmatpush1.bf16.msra.mxu0 0
        %525 = vmatprep.subr.bf16.mxu0 0
        %526 = vmatpush1.bf16.msra.mxu0 0
        %527 = vmatprep.subr.bf16.mxu0 0
        %528 = vmatpush1.bf16.msra.mxu0 0
        %529 = vmatprep.subr.bf16.mxu0 0
        %530 = vmatpush1.bf16.msra.mxu0 0
        %531 = vmatprep.subr.bf16.mxu0 0
        %532 = vmatpush1.bf16.msra.mxu0 %v510
        %533 = vmatprep.subr.bf16.mxu0 0
        %534 = vmatpush1.bf16.msra.mxu0 %v508
        %535 = vmatprep.subr.bf16.mxu0 0
        %536 = vmatpush2.bf16.msra.mxu0 0
        %537 = vmatprep.subr.bf16.mxu0 0
        %538 = vmatpush2.bf16.msra.mxu0 0
        %539 = vmatprep.subr.bf16.mxu0 0
        %540 = vmatpush2.bf16.msra.mxu0 0
        %541 = vmatprep.subr.bf16.mxu0 0
        %542 = vmatpush2.bf16.msra.mxu0 0
        %543 = vmatprep.subr.bf16.mxu0 0
        %544 = vmatpush2.bf16.msra.mxu0 0
        %545 = vmatprep.subr.bf16.mxu0 0
        %546 = vmatpush2.bf16.msra.mxu0 0
        %547 = vmatprep.subr.bf16.mxu0 0
        %548 = vmatpush2.bf16.msra.mxu0 0
        %549 = vmatprep.subr.bf16.mxu0 0
        %550 = vmatpush2.bf16.msra.mxu0 0
        %551 = vmatprep.mubr.bf16.mxu0 0
        %552 = vmatmul.mubr.bf16.gmra.mxu0 %v517
        %v553 = vpop.f32.mrf.mxu0
        %v554 = vadd.f32 %v514, %v553
        %v555 = vpop.f32.mrf.mxu0
        %v556 = vpop.f32.mrf.mxu0
        %v557 = vpop.f32.mrf.mxu0
        %558 = vdwg.mxu0
        %v559 = vpack.c.bf16 %v554, %v554
        %561 = vrot.lane.b32.xlu0 %v559, 120
        %v562 = vpop.permute.xlu0 %561
        %563 = vrot.lane.b32.xlu0 %v559, 112
        %v564 = vpop.permute.xlu0 %563
        %565 = vrot.lane.b32.xlu0 %v559, 104
        %v566 = vpop.permute.xlu0 %565
        %v568 = vunpack.c.l.s4 1983009808
        %v569 = vunpack.c.0.s8 %v568
        %v570 = vlaneseq
        %v571 = vshrl.u32 %v570, 7
        %v572 = vsub.s32 %v569, %v571
        %v573 = vrot.slane %v559, %v572
        %v576 = vunpack.c.l.s4 1983009808
        %v577 = vunpack.c.0.s8 %v576
        %v578 = vlaneseq
        %v579 = vshrl.u32 %v578, 7
        %v580 = vsub.s32 %v577, %v579
        %v581 = vrot.slane %v564, %v580
        %v582 = vcombine.low %v573, %v581
        %v583 = vcombine.high %v573, %v581
        %v585 = vunpack.c.l.s4 1934713408
        %v586 = vunpack.c.0.s8 %v585
        %v587 = vlaneseq
        %v588 = vshrl.u32 %v587, 7
        %v589 = vsub.s32 %v586, %v588
        %v590 = vrot.slane %v582, %v589
        %v592 = vunpack.c.l.s4 1934713408
        %v593 = vunpack.c.0.s8 %v592
        %v594 = vlaneseq
        %v595 = vshrl.u32 %v594, 7
        %v596 = vsub.s32 %v593, %v595
        %v597 = vrot.slane %v583, %v596
        %v598 = vcombine.high %v590, 0
        %v599 = vcombine.high %v597, 0
        %v602 = vunpack.c.l.s4 1983009808
        %v603 = vunpack.c.0.s8 %v602
        %v604 = vlaneseq
        %v605 = vshrl.u32 %v604, 7
        %v606 = vsub.s32 %v603, %v605
        %v607 = vrot.slane %v562, %v606
        %v610 = vunpack.c.l.s4 1983009808
        %v611 = vunpack.c.0.s8 %v610
        %v612 = vlaneseq
        %v613 = vshrl.u32 %v612, 7
        %v614 = vsub.s32 %v611, %v613
        %v615 = vrot.slane %v566, %v614
        %v616 = vcombine.low %v607, %v615
        %v617 = vcombine.high %v607, %v615
        %v619 = vunpack.c.l.s4 1934713408
        %v620 = vunpack.c.0.s8 %v619
        %v621 = vlaneseq
        %v622 = vshrl.u32 %v621, 7
        %v623 = vsub.s32 %v620, %v622
        %v624 = vrot.slane %v616, %v623
        %v626 = vunpack.c.l.s4 1934713408
        %v627 = vunpack.c.0.s8 %v626
        %v628 = vlaneseq
        %v629 = vshrl.u32 %v628, 7
        %v630 = vsub.s32 %v627, %v629
        %v631 = vrot.slane %v617, %v630
        %v632 = vcombine.high %v624, 0
        %v633 = vcombine.high %v631, 0
        %v636 = vpack.i.b16 %v624, %v590
        %v638 = vshrl.u32 %v590, 16
        %v639 = vshrl.u32 %v624, 16
        %v640 = vpack.i.b16 %v639, %v638
        %v644 = vpack.i.b16 %v632, %v598
        %v646 = vshrl.u32 %v598, 16
        %v647 = vshrl.u32 %v632, 16
        %v648 = vpack.i.b16 %v647, %v646
        %v652 = vpack.i.b16 %v631, %v597
        %v654 = vshrl.u32 %v597, 16
        %v655 = vshrl.u32 %v631, 16
        %v656 = vpack.i.b16 %v655, %v654
        %v660 = vpack.i.b16 %v633, %v599
        %v662 = vshrl.u32 %v599, 16
        %v663 = vshrl.u32 %v633, 16
        %v664 = vpack.i.b16 %v663, %v662
        %666 = vrot.lane.b32.xlu0 %v559, 96
        %v667 = vpop.permute.xlu0 %666
        %668 = vrot.lane.b32.xlu0 %v562, 96
        %v669 = vpop.permute.xlu0 %668
        %670 = vrot.lane.b32.xlu0 %v564, 96
        %v671 = vpop.permute.xlu0 %670
        %672 = vrot.lane.b32.xlu0 %v566, 96
        %v673 = vpop.permute.xlu0 %672
        %v676 = vunpack.c.l.s4 1983009808
        %v677 = vunpack.c.0.s8 %v676
        %v678 = vlaneseq
        %v679 = vshrl.u32 %v678, 7
        %v680 = vsub.s32 %v677, %v679
        %v681 = vrot.slane %v667, %v680
        %v684 = vunpack.c.l.s4 1983009808
        %v685 = vunpack.c.0.s8 %v684
        %v686 = vlaneseq
        %v687 = vshrl.u32 %v686, 7
        %v688 = vsub.s32 %v685, %v687
        %v689 = vrot.slane %v671, %v688
        %v690 = vcombine.low %v681, %v689
        %v691 = vcombine.high %v681, %v689
        %v693 = vunpack.c.l.s4 1934713408
        %v694 = vunpack.c.0.s8 %v693
        %v695 = vlaneseq
        %v696 = vshrl.u32 %v695, 7
        %v697 = vsub.s32 %v694, %v696
        %v698 = vrot.slane %v690, %v697
        %v700 = vunpack.c.l.s4 1934713408
        %v701 = vunpack.c.0.s8 %v700
        %v702 = vlaneseq
        %v703 = vshrl.u32 %v702, 7
        %v704 = vsub.s32 %v701, %v703
        %v705 = vrot.slane %v691, %v704
        %v706 = vcombine.high %v698, 0
        %v707 = vcombine.high %v705, 0
        %v710 = vunpack.c.l.s4 1983009808
        %v711 = vunpack.c.0.s8 %v710
        %v712 = vlaneseq
        %v713 = vshrl.u32 %v712, 7
        %v714 = vsub.s32 %v711, %v713
        %v715 = vrot.slane %v669, %v714
        %v718 = vunpack.c.l.s4 1983009808
        %v719 = vunpack.c.0.s8 %v718
        %v720 = vlaneseq
        %v721 = vshrl.u32 %v720, 7
        %v722 = vsub.s32 %v719, %v721
        %v723 = vrot.slane %v673, %v722
        %v724 = vcombine.low %v715, %v723
        %v725 = vcombine.high %v715, %v723
        %v727 = vunpack.c.l.s4 1934713408
        %v728 = vunpack.c.0.s8 %v727
        %v729 = vlaneseq
        %v730 = vshrl.u32 %v729, 7
        %v731 = vsub.s32 %v728, %v730
        %v732 = vrot.slane %v724, %v731
        %v734 = vunpack.c.l.s4 1934713408
        %v735 = vunpack.c.0.s8 %v734
        %v736 = vlaneseq
        %v737 = vshrl.u32 %v736, 7
        %v738 = vsub.s32 %v735, %v737
        %v739 = vrot.slane %v725, %v738
        %v740 = vcombine.high %v732, 0
        %v741 = vcombine.high %v739, 0
        %v744 = vpack.i.b16 %v732, %v698
        %v746 = vshrl.u32 %v698, 16
        %v747 = vshrl.u32 %v732, 16
        %v748 = vpack.i.b16 %v747, %v746
        %v752 = vpack.i.b16 %v740, %v706
        %v754 = vshrl.u32 %v706, 16
        %v755 = vshrl.u32 %v740, 16
        %v756 = vpack.i.b16 %v755, %v754
        %v760 = vpack.i.b16 %v739, %v705
        %v762 = vshrl.u32 %v705, 16
        %v763 = vshrl.u32 %v739, 16
        %v764 = vpack.i.b16 %v763, %v762
        %v768 = vpack.i.b16 %v741, %v707
        %v770 = vshrl.u32 %v707, 16
        %v771 = vshrl.u32 %v741, 16
        %v772 = vpack.i.b16 %v771, %v770
        %v774 = vcombine.low %v636, %v652
        %v776 = vunpack.c.l.s4 1983009808
        %v777 = vunpack.c.0.s8 %v776
        %v778 = vlaneseq
        %v779 = vshrl.u32 %v778, 7
        %v780 = vsub.s32 %v777, %v779
        %v781 = vrot.slane %v774, %v780
        %v782 = vcombine.low %v644, %v660
        %v784 = vunpack.c.l.s4 1983009808
        %v785 = vunpack.c.0.s8 %v784
        %v786 = vlaneseq
        %v787 = vshrl.u32 %v786, 7
        %v788 = vsub.s32 %v785, %v787
        %v789 = vrot.slane %v782, %v788
        %v790 = vcombine.low %v781, %v789
        %v792 = vunpack.c.l.s4 1934713408
        %v793 = vunpack.c.0.s8 %v792
        %v794 = vlaneseq
        %v795 = vshrl.u32 %v794, 7
        %v796 = vsub.s32 %v793, %v795
        %v797 = vrot.slane %v790, %v796
        %v798 = vcombine.high %v797, 0
        %v799 = vcombine.low %v640, %v656
        %v801 = vunpack.c.l.s4 1983009808
        %v802 = vunpack.c.0.s8 %v801
        %v803 = vlaneseq
        %v804 = vshrl.u32 %v803, 7
        %v805 = vsub.s32 %v802, %v804
        %v806 = vrot.slane %v799, %v805
        %v807 = vcombine.low %v648, %v664
        %v809 = vunpack.c.l.s4 1983009808
        %v810 = vunpack.c.0.s8 %v809
        %v811 = vlaneseq
        %v812 = vshrl.u32 %v811, 7
        %v813 = vsub.s32 %v810, %v812
        %v814 = vrot.slane %v807, %v813
        %v815 = vcombine.low %v806, %v814
        %v817 = vunpack.c.l.s4 1934713408
        %v818 = vunpack.c.0.s8 %v817
        %v819 = vlaneseq
        %v820 = vshrl.u32 %v819, 7
        %v821 = vsub.s32 %v818, %v820
        %v822 = vrot.slane %v815, %v821
        %v823 = vcombine.high %v822, 0
        %v826 = vpack.i.b16 %v822, %v797
        %v827 = vshrl.u32 %v797, 16
        %v828 = vshrl.u32 %v822, 16
        %v829 = vpack.i.b16 %v828, %v827
        %v832 = vpack.i.b16 %v823, %v798
        %v833 = vshrl.u32 %v798, 16
        %v834 = vshrl.u32 %v823, 16
        %v835 = vpack.i.b16 %v834, %v833
        %v836 = vcombine.low %v744, %v760
        %v838 = vunpack.c.l.s4 1983009808
        %v839 = vunpack.c.0.s8 %v838
        %v840 = vlaneseq
        %v841 = vshrl.u32 %v840, 7
        %v842 = vsub.s32 %v839, %v841
        %v843 = vrot.slane %v836, %v842
        %v844 = vcombine.low %v752, %v768
        %v846 = vunpack.c.l.s4 1983009808
        %v847 = vunpack.c.0.s8 %v846
        %v848 = vlaneseq
        %v849 = vshrl.u32 %v848, 7
        %v850 = vsub.s32 %v847, %v849
        %v851 = vrot.slane %v844, %v850
        %v852 = vcombine.low %v843, %v851
        %v854 = vunpack.c.l.s4 1934713408
        %v855 = vunpack.c.0.s8 %v854
        %v856 = vlaneseq
        %v857 = vshrl.u32 %v856, 7
        %v858 = vsub.s32 %v855, %v857
        %v859 = vrot.slane %v852, %v858
        %v860 = vcombine.high %v859, 0
        %v861 = vcombine.low %v748, %v764
        %v863 = vunpack.c.l.s4 1983009808
        %v864 = vunpack.c.0.s8 %v863
        %v865 = vlaneseq
        %v866 = vshrl.u32 %v865, 7
        %v867 = vsub.s32 %v864, %v866
        %v868 = vrot.slane %v861, %v867
        %v869 = vcombine.low %v756, %v772
        %v871 = vunpack.c.l.s4 1983009808
        %v872 = vunpack.c.0.s8 %v871
        %v873 = vlaneseq
        %v874 = vshrl.u32 %v873, 7
        %v875 = vsub.s32 %v872, %v874
        %v876 = vrot.slane %v869, %v875
        %v877 = vcombine.low %v868, %v876
        %v879 = vunpack.c.l.s4 1934713408
        %v880 = vunpack.c.0.s8 %v879
        %v881 = vlaneseq
        %v882 = vshrl.u32 %v881, 7
        %v883 = vsub.s32 %v880, %v882
        %v884 = vrot.slane %v877, %v883
        %v885 = vcombine.high %v884, 0
        %v888 = vpack.i.b16 %v884, %v859
        %v889 = vshrl.u32 %v859, 16
        %v890 = vshrl.u32 %v884, 16
        %v891 = vpack.i.b16 %v890, %v889
        %v894 = vpack.i.b16 %v885, %v860
        %v895 = vshrl.u32 %v860, 16
        %v896 = vshrl.u32 %v885, 16
        %v897 = vpack.i.b16 %v896, %v895
        %v898 = vsel %vm462, %v461, 0.0
        %899 = vadd.xlane.f32.xlu0 %v898
        %v900 = vpop.xlane.xlu0 %899
        %v901 = vmul.f32 %v900, %v466
        %v902 = vsub.f32 %v461, %v901
        %v903 = vmul.f32 %v902, %v902
        %v904 = vsel %vm462, %v903, 0.0
        %905 = vadd.xlane.f32.xlu0 %v904
        %v906 = vpop.xlane.xlu0 %905
        %v907 = vmul.f32 %v906, %v466
        %v908 = vadd.f32 %v907, 1e-05
        %v909 = vrsqrt.pop %v908
        %v910 = vmul.f32 %v902, %v909
        %v911 = vmul.f32 %v910, %v481
        %v912 = vadd.f32 %v911, %v488
        %v913 = vpack.c.bf16 %v912, %v912
        %v918 = vsel %vm462, %v913, 0
        %920 = vmatprep.subr.bf16.mxu0 0
        %921 = vmatpush1.bf16.msra.mxu0 0
        %922 = vmatprep.subr.bf16.mxu0 0
        %923 = vmatpush1.bf16.msra.mxu0 0
        %924 = vmatprep.subr.bf16.mxu0 0
        %925 = vmatpush1.bf16.msra.mxu0 0
        %926 = vmatprep.subr.bf16.mxu0 0
        %927 = vmatpush1.bf16.msra.mxu0 0
        %928 = vmatprep.subr.bf16.mxu0 0
        %929 = vmatpush1.bf16.msra.mxu0 0
        %930 = vmatprep.subr.bf16.mxu0 0
        %931 = vmatpush1.bf16.msra.mxu0 0
        %932 = vmatprep.subr.bf16.mxu0 0
        %933 = vmatpush1.bf16.msra.mxu0 %v506
        %934 = vmatprep.subr.bf16.mxu0 0
        %935 = vmatpush1.bf16.msra.mxu0 %v505
        %936 = vmatprep.subr.bf16.mxu0 0
        %937 = vmatpush2.bf16.msra.mxu0 0
        %938 = vmatprep.subr.bf16.mxu0 0
        %939 = vmatpush2.bf16.msra.mxu0 0
        %940 = vmatprep.subr.bf16.mxu0 0
        %941 = vmatpush2.bf16.msra.mxu0 0
        %942 = vmatprep.subr.bf16.mxu0 0
        %943 = vmatpush2.bf16.msra.mxu0 0
        %944 = vmatprep.subr.bf16.mxu0 0
        %945 = vmatpush2.bf16.msra.mxu0 0
        %946 = vmatprep.subr.bf16.mxu0 0
        %947 = vmatpush2.bf16.msra.mxu0 0
        %948 = vmatprep.subr.bf16.mxu0 0
        %949 = vmatpush2.bf16.msra.mxu0 0
        %950 = vmatprep.subr.bf16.mxu0 0
        %951 = vmatpush2.bf16.msra.mxu0 0
        %952 = vmatprep.mubr.bf16.mxu0 0
        %953 = vmatmul.mubr.bf16.gmra.mxu0 %v918
        %v954 = vpop.f32.mrf.mxu0
        %v955 = vadd.f32 %v496, %v954
        %v956 = vpop.f32.mrf.mxu0
        %v957 = vpop.f32.mrf.mxu0
        %v958 = vpop.f32.mrf.mxu0
        %959 = vdwg.mxu0
        %v960 = vmul.f32 %v955, 0.35355338
        %v961 = vpack.c.bf16 %v960, %v960
        %963 = vrot.lane.b32.xlu0 %v961, 120
        %v964 = vpop.permute.xlu0 %963
        %965 = vrot.lane.b32.xlu0 %v961, 112
        %v966 = vpop.permute.xlu0 %965
        %967 = vrot.lane.b32.xlu0 %v961, 104
        %v968 = vpop.permute.xlu0 %967
        %v970 = vunpack.c.l.s4 1983009808
        %v971 = vunpack.c.0.s8 %v970
        %v972 = vlaneseq
        %v973 = vshrl.u32 %v972, 7
        %v974 = vsub.s32 %v971, %v973
        %v975 = vrot.slane %v961, %v974
        %v978 = vunpack.c.l.s4 1983009808
        %v979 = vunpack.c.0.s8 %v978
        %v980 = vlaneseq
        %v981 = vshrl.u32 %v980, 7
        %v982 = vsub.s32 %v979, %v981
        %v983 = vrot.slane %v966, %v982
        %v984 = vcombine.low %v975, %v983
        %v985 = vcombine.high %v975, %v983
        %v987 = vunpack.c.l.s4 1934713408
        %v988 = vunpack.c.0.s8 %v987
        %v989 = vlaneseq
        %v990 = vshrl.u32 %v989, 7
        %v991 = vsub.s32 %v988, %v990
        %v992 = vrot.slane %v984, %v991
        %v994 = vunpack.c.l.s4 1934713408
        %v995 = vunpack.c.0.s8 %v994
        %v996 = vlaneseq
        %v997 = vshrl.u32 %v996, 7
        %v998 = vsub.s32 %v995, %v997
        %v999 = vrot.slane %v985, %v998
        %v1000 = vcombine.high %v992, 0
        %v1001 = vcombine.high %v999, 0
        %v1004 = vunpack.c.l.s4 1983009808
        %v1005 = vunpack.c.0.s8 %v1004
        %v1006 = vlaneseq
        %v1007 = vshrl.u32 %v1006, 7
        %v1008 = vsub.s32 %v1005, %v1007
        %v1009 = vrot.slane %v964, %v1008
        %v1012 = vunpack.c.l.s4 1983009808
        %v1013 = vunpack.c.0.s8 %v1012
        %v1014 = vlaneseq
        %v1015 = vshrl.u32 %v1014, 7
        %v1016 = vsub.s32 %v1013, %v1015
        %v1017 = vrot.slane %v968, %v1016
        %v1018 = vcombine.low %v1009, %v1017
        %v1019 = vcombine.high %v1009, %v1017
        %v1021 = vunpack.c.l.s4 1934713408
        %v1022 = vunpack.c.0.s8 %v1021
        %v1023 = vlaneseq
        %v1024 = vshrl.u32 %v1023, 7
        %v1025 = vsub.s32 %v1022, %v1024
        %v1026 = vrot.slane %v1018, %v1025
        %v1028 = vunpack.c.l.s4 1934713408
        %v1029 = vunpack.c.0.s8 %v1028
        %v1030 = vlaneseq
        %v1031 = vshrl.u32 %v1030, 7
        %v1032 = vsub.s32 %v1029, %v1031
        %v1033 = vrot.slane %v1019, %v1032
        %v1034 = vcombine.high %v1026, 0
        %v1035 = vcombine.high %v1033, 0
        %v1038 = vpack.i.b16 %v1026, %v992
        %v1040 = vshrl.u32 %v992, 16
        %v1041 = vshrl.u32 %v1026, 16
        %v1042 = vpack.i.b16 %v1041, %v1040
        %v1046 = vpack.i.b16 %v1034, %v1000
        %v1048 = vshrl.u32 %v1000, 16
        %v1049 = vshrl.u32 %v1034, 16
        %v1050 = vpack.i.b16 %v1049, %v1048
        %v1054 = vpack.i.b16 %v1033, %v999
        %v1056 = vshrl.u32 %v999, 16
        %v1057 = vshrl.u32 %v1033, 16
        %v1058 = vpack.i.b16 %v1057, %v1056
        %v1062 = vpack.i.b16 %v1035, %v1001
        %v1064 = vshrl.u32 %v1001, 16
        %v1065 = vshrl.u32 %v1035, 16
        %v1066 = vpack.i.b16 %v1065, %v1064
        %v1068 = vcombine.low %v1038, %v1054
        %v1070 = vunpack.c.l.s4 1983009808
        %v1071 = vunpack.c.0.s8 %v1070
        %v1072 = vlaneseq
        %v1073 = vshrl.u32 %v1072, 7
        %v1074 = vsub.s32 %v1071, %v1073
        %v1075 = vrot.slane %v1068, %v1074
        %v1076 = vcombine.low %v1046, %v1062
        %v1078 = vunpack.c.l.s4 1983009808
        %v1079 = vunpack.c.0.s8 %v1078
        %v1080 = vlaneseq
        %v1081 = vshrl.u32 %v1080, 7
        %v1082 = vsub.s32 %v1079, %v1081
        %v1083 = vrot.slane %v1076, %v1082
        %v1084 = vcombine.low %v1075, %v1083
        %v1086 = vunpack.c.l.s4 1934713408
        %v1087 = vunpack.c.0.s8 %v1086
        %v1088 = vlaneseq
        %v1089 = vshrl.u32 %v1088, 7
        %v1090 = vsub.s32 %v1087, %v1089
        %v1091 = vrot.slane %v1084, %v1090
        %v1092 = vcombine.high %v1091, 0
        %v1093 = vcombine.low %v1042, %v1058
        %v1095 = vunpack.c.l.s4 1983009808
        %v1096 = vunpack.c.0.s8 %v1095
        %v1097 = vlaneseq
        %v1098 = vshrl.u32 %v1097, 7
        %v1099 = vsub.s32 %v1096, %v1098
        %v1100 = vrot.slane %v1093, %v1099
        %v1101 = vcombine.low %v1050, %v1066
        %v1103 = vunpack.c.l.s4 1983009808
        %v1104 = vunpack.c.0.s8 %v1103
        %v1105 = vlaneseq
        %v1106 = vshrl.u32 %v1105, 7
        %v1107 = vsub.s32 %v1104, %v1106
        %v1108 = vrot.slane %v1101, %v1107
        %v1109 = vcombine.low %v1100, %v1108
        %v1111 = vunpack.c.l.s4 1934713408
        %v1112 = vunpack.c.0.s8 %v1111
        %v1113 = vlaneseq
        %v1114 = vshrl.u32 %v1113, 7
        %v1115 = vsub.s32 %v1112, %v1114
        %v1116 = vrot.slane %v1109, %v1115
        %v1117 = vcombine.high %v1116, 0
        %v1120 = vpack.i.b16 %v1116, %v1091
        %v1121 = vshrl.u32 %v1091, 16
        %v1122 = vshrl.u32 %v1116, 16
        %v1123 = vpack.i.b16 %v1122, %v1121
        %v1126 = vpack.i.b16 %v1117, %v1092
        %v1127 = vshrl.u32 %v1092, 16
        %v1128 = vshrl.u32 %v1117, 16
        %v1129 = vpack.i.b16 %v1128, %v1127
        %vm1130 = vcmask 64512
        %v1132 = vsel %vm1130, %v1120, 0
        %v1135 = vsel %vm1130, %v826, 0
        %1137 = vmatprep.subr.bf16.mxu0 0
        %1138 = vmatpush1.bf16.xpose.msra.mxu0 0
        %1139 = vmatprep.subr.bf16.mxu0 0
        %1140 = vmatpush1.bf16.xpose.msra.mxu0 0
        %1141 = vmatprep.subr.bf16.mxu0 0
        %1142 = vmatpush1.bf16.xpose.msra.mxu0 0
        %1143 = vmatprep.subr.bf16.mxu0 0
        %1144 = vmatpush1.bf16.xpose.msra.mxu0 0
        %1145 = vmatprep.subr.bf16.mxu0 0
        %1146 = vmatpush1.bf16.xpose.msra.mxu0 0
        %1147 = vmatprep.subr.bf16.mxu0 0
        %1148 = vmatpush1.bf16.xpose.msra.mxu0 0
        %1149 = vmatprep.subr.bf16.mxu0 0
        %1150 = vmatpush1.bf16.xpose.msra.mxu0 0
        %1151 = vmatprep.subr.bf16.mxu0 0
        %1152 = vmatpush1.bf16.xpose.msra.mxu0 %v1135
        %1153 = vmatprep.subr.bf16.mxu0 0
        %1154 = vmatpush2.bf16.xpose.msra.mxu0 0
        %1155 = vmatprep.subr.bf16.mxu0 0
        %1156 = vmatpush2.bf16.xpose.msra.mxu0 0
        %1157 = vmatprep.subr.bf16.mxu0 0
        %1158 = vmatpush2.bf16.xpose.msra.mxu0 0
        %1159 = vmatprep.subr.bf16.mxu0 0
        %1160 = vmatpush2.bf16.xpose.msra.mxu0 0
        %1161 = vmatprep.subr.bf16.mxu0 0
        %1162 = vmatpush2.bf16.xpose.msra.mxu0 0
        %1163 = vmatprep.subr.bf16.mxu0 0
        %1164 = vmatpush2.bf16.xpose.msra.mxu0 0
        %1165 = vmatprep.subr.bf16.mxu0 0
        %1166 = vmatpush2.bf16.xpose.msra.mxu0 0
        %1167 = vmatprep.subr.bf16.mxu0 0
        %1168 = vmatpush2.bf16.xpose.msra.mxu0 0
        %1169 = vmatprep.mubr.bf16.mxu0 0
        %1170 = vmatmul.mubr.bf16.gmra.mxu0 %v1132
        %v1171 = vpop.f32.mrf.mxu0
        %v1172 = vadd.f32 0.0, %v1171
        %v1173 = vpop.f32.mrf.mxu0
        %v1174 = vpop.f32.mrf.mxu0
        %v1175 = vpop.f32.mrf.mxu0
        %1176 = vdwg.mxu0
        %v1178 = vsel %vm1130, %v1123, 0
        %v1181 = vsel %vm1130, %v829, 0
        %1183 = vmatprep.subr.bf16.mxu0 0
        %1184 = vmatpush1.bf16.xpose.msra.mxu0 0
        %1185 = vmatprep.subr.bf16.mxu0 0
        %1186 = vmatpush1.bf16.xpose.msra.mxu0 0
        %1187 = vmatprep.subr.bf16.mxu0 0
        %1188 = vmatpush1.bf16.xpose.msra.mxu0 0
        %1189 = vmatprep.subr.bf16.mxu0 0
        %1190 = vmatpush1.bf16.xpose.msra.mxu0 0
        %1191 = vmatprep.subr.bf16.mxu0 0
        %1192 = vmatpush1.bf16.xpose.msra.mxu0 0
        %1193 = vmatprep.subr.bf16.mxu0 0
        %1194 = vmatpush1.bf16.xpose.msra.mxu0 0
        %1195 = vmatprep.subr.bf16.mxu0 0
        %1196 = vmatpush1.bf16.xpose.msra.mxu0 0
        %1197 = vmatprep.subr.bf16.mxu0 0
        %1198 = vmatpush1.bf16.xpose.msra.mxu0 %v1181
        %1199 = vmatprep.subr.bf16.mxu0 0
        %1200 = vmatpush2.bf16.xpose.msra.mxu0 0
        %1201 = vmatprep.subr.bf16.mxu0 0
        %1202 = vmatpush2.bf16.xpose.msra.mxu0 0
        %1203 = vmatprep.subr.bf16.mxu0 0
        %1204 = vmatpush2.bf16.xpose.msra.mxu0 0
        %1205 = vmatprep.subr.bf16.mxu0 0
        %1206 = vmatpush2.bf16.xpose.msra.mxu0 0
        %1207 = vmatprep.subr.bf16.mxu0 0
        %1208 = vmatpush2.bf16.xpose.msra.mxu0 0
        %1209 = vmatprep.subr.bf16.mxu0 0
        %1210 = vmatpush2.bf16.xpose.msra.mxu0 0
        %1211 = vmatprep.subr.bf16.mxu0 0
        %1212 = vmatpush2.bf16.xpose.msra.mxu0 0
        %1213 = vmatprep.subr.bf16.mxu0 0
        %1214 = vmatpush2.bf16.xpose.msra.mxu0 0
        %1215 = vmatprep.mubr.bf16.mxu0 0
        %1216 = vmatmul.mubr.bf16.gmra.mxu0 %v1178
        %v1217 = vpop.f32.mrf.mxu0
        %v1218 = vadd.f32 0.0, %v1217
        %v1219 = vpop.f32.mrf.mxu0
        %v1220 = vpop.f32.mrf.mxu0
        %v1221 = vpop.f32.mrf.mxu0
        %1222 = vdwg.mxu0
        %v1224 = vsel %vm1130, %v1126, 0
        %v1227 = vsel %vm1130, %v832, 0
        %1229 = vmatprep.subr.bf16.mxu0 0
        %1230 = vmatpush1.bf16.xpose.msra.mxu0 0
        %1231 = vmatprep.subr.bf16.mxu0 0
        %1232 = vmatpush1.bf16.xpose.msra.mxu0 0
        %1233 = vmatprep.subr.bf16.mxu0 0
        %1234 = vmatpush1.bf16.xpose.msra.mxu0 0
        %1235 = vmatprep.subr.bf16.mxu0 0
        %1236 = vmatpush1.bf16.xpose.msra.mxu0 0
        %1237 = vmatprep.subr.bf16.mxu0 0
        %1238 = vmatpush1.bf16.xpose.msra.mxu0 0
        %1239 = vmatprep.subr.bf16.mxu0 0
        %1240 = vmatpush1.bf16.xpose.msra.mxu0 0
        %1241 = vmatprep.subr.bf16.mxu0 0
        %1242 = vmatpush1.bf16.xpose.msra.mxu0 0
        %1243 = vmatprep.subr.bf16.mxu0 0
        %1244 = vmatpush1.bf16.xpose.msra.mxu0 %v1227
        %1245 = vmatprep.subr.bf16.mxu0 0
        %1246 = vmatpush2.bf16.xpose.msra.mxu0 0
        %1247 = vmatprep.subr.bf16.mxu0 0
        %1248 = vmatpush2.bf16.xpose.msra.mxu0 0
        %1249 = vmatprep.subr.bf16.mxu0 0
        %1250 = vmatpush2.bf16.xpose.msra.mxu0 0
        %1251 = vmatprep.subr.bf16.mxu0 0
        %1252 = vmatpush2.bf16.xpose.msra.mxu0 0
        %1253 = vmatprep.subr.bf16.mxu0 0
        %1254 = vmatpush2.bf16.xpose.msra.mxu0 0
        %1255 = vmatprep.subr.bf16.mxu0 0
        %1256 = vmatpush2.bf16.xpose.msra.mxu0 0
        %1257 = vmatprep.subr.bf16.mxu0 0
        %1258 = vmatpush2.bf16.xpose.msra.mxu0 0
        %1259 = vmatprep.subr.bf16.mxu0 0
        %1260 = vmatpush2.bf16.xpose.msra.mxu0 0
        %1261 = vmatprep.mubr.bf16.mxu0 0
        %1262 = vmatmul.mubr.bf16.gmra.mxu0 %v1224
        %v1263 = vpop.f32.mrf.mxu0
        %v1264 = vadd.f32 0.0, %v1263
        %v1265 = vpop.f32.mrf.mxu0
        %v1266 = vpop.f32.mrf.mxu0
        %v1267 = vpop.f32.mrf.mxu0
        %1268 = vdwg.mxu0
        %v1270 = vsel %vm1130, %v1129, 0
        %v1273 = vsel %vm1130, %v835, 0
        %1275 = vmatprep.subr.bf16.mxu0 0
        %1276 = vmatpush1.bf16.xpose.msra.mxu0 0
        %1277 = vmatprep.subr.bf16.mxu0 0
        %1278 = vmatpush1.bf16.xpose.msra.mxu0 0
        %1279 = vmatprep.subr.bf16.mxu0 0
        %1280 = vmatpush1.bf16.xpose.msra.mxu0 0
        %1281 = vmatprep.subr.bf16.mxu0 0
        %1282 = vmatpush1.bf16.xpose.msra.mxu0 0
        %1283 = vmatprep.subr.bf16.mxu0 0
        %1284 = vmatpush1.bf16.xpose.msra.mxu0 0
        %1285 = vmatprep.subr.bf16.mxu0 0
        %1286 = vmatpush1.bf16.xpose.msra.mxu0 0
        %1287 = vmatprep.subr.bf16.mxu0 0
        %1288 = vmatpush1.bf16.xpose.msra.mxu0 0
        %1289 = vmatprep.subr.bf16.mxu0 0
        %1290 = vmatpush1.bf16.xpose.msra.mxu0 %v1273
        %1291 = vmatprep.subr.bf16.mxu0 0
        %1292 = vmatpush2.bf16.xpose.msra.mxu0 0
        %1293 = vmatprep.subr.bf16.mxu0 0
        %1294 = vmatpush2.bf16.xpose.msra.mxu0 0
        %1295 = vmatprep.subr.bf16.mxu0 0
        %1296 = vmatpush2.bf16.xpose.msra.mxu0 0
        %1297 = vmatprep.subr.bf16.mxu0 0
        %1298 = vmatpush2.bf16.xpose.msra.mxu0 0
        %1299 = vmatprep.subr.bf16.mxu0 0
        %1300 = vmatpush2.bf16.xpose.msra.mxu0 0
        %1301 = vmatprep.subr.bf16.mxu0 0
        %1302 = vmatpush2.bf16.xpose.msra.mxu0 0
        %1303 = vmatprep.subr.bf16.mxu0 0
        %1304 = vmatpush2.bf16.xpose.msra.mxu0 0
        %1305 = vmatprep.subr.bf16.mxu0 0
        %1306 = vmatpush2.bf16.xpose.msra.mxu0 0
        %1307 = vmatprep.mubr.bf16.mxu0 0
        %1308 = vmatmul.mubr.bf16.gmra.mxu0 %v1270
        %v1309 = vpop.f32.mrf.mxu0
        %v1310 = vadd.f32 0.0, %v1309
        %v1311 = vpop.f32.mrf.mxu0
        %v1312 = vpop.f32.mrf.mxu0
        %v1313 = vpop.f32.mrf.mxu0
        %1314 = vdwg.mxu0
        %v1315 = vlaneseq
        %v1316 = vshrl.u32 %v1315, 7
        %v1317 = vstv %s451
        %v1318 = vadd.s32 %v1317, %v1316
        %v1319 = vlaneseq
        %v1320 = vand.u32 %v1319, 127
        %vm1321 = vcmp.ge.s32.totalorder %v1318, %v1320
        %v1322 = vsel %vm1321, 1, 0
        %vm1323 = vcmp.eq.s32.totalorder %v1322, 1
        %v1324 = vsel %vm1323, %v1172, -1e+30
        %v1325 = vsel %vm1323, %v1218, -1e+30
        %v1326 = vsel %vm1323, %v1264, -1e+30
        %v1327 = vsel %vm1323, %v1310, -1e+30
        %v1328 = vsel %vm1130, %v1324, -inf
        %1329 = vmax.xlane.f32.xlu0 %v1328
        %v1330 = vpop.xlane.xlu0 %1329
        %v1331 = vsel %vm1130, %v1325, -inf
        %1332 = vmax.xlane.f32.xlu0 %v1331
        %v1333 = vpop.xlane.xlu0 %1332
        %v1334 = vsel %vm1130, %v1326, -inf
        %1335 = vmax.xlane.f32.xlu0 %v1334
        %v1336 = vpop.xlane.xlu0 %1335
        %v1337 = vsel %vm1130, %v1327, -inf
        %1338 = vmax.xlane.f32.xlu0 %v1337
        %v1339 = vpop.xlane.xlu0 %1338
        %v1340 = vsub.f32 %v1324, %v1330
        %v1341 = vsub.f32 %v1325, %v1333
        %v1342 = vsub.f32 %v1326, %v1336
        %v1343 = vsub.f32 %v1327, %v1339
        %v1344 = vmul.f32 %v1340, 1.442695
        %v1345 = vpow.pop %v1344
        %v1346 = vmul.f32 %v1341, 1.442695
        %v1347 = vpow.pop %v1346
        %v1348 = vmul.f32 %v1342, 1.442695
        %v1349 = vpow.pop %v1348
        %v1350 = vmul.f32 %v1343, 1.442695
        %v1351 = vpow.pop %v1350
        %v1352 = vsel %vm1130, %v1345, 0.0
        %1353 = vadd.xlane.f32.xlu0 %v1352
        %v1354 = vpop.xlane.xlu0 %1353
        %v1355 = vsel %vm1130, %v1347, 0.0
        %1356 = vadd.xlane.f32.xlu0 %v1355
        %v1357 = vpop.xlane.xlu0 %1356
        %v1358 = vsel %vm1130, %v1349, 0.0
        %1359 = vadd.xlane.f32.xlu0 %v1358
        %v1360 = vpop.xlane.xlu0 %1359
        %v1361 = vsel %vm1130, %v1351, 0.0
        %1362 = vadd.xlane.f32.xlu0 %v1361
        %v1363 = vpop.xlane.xlu0 %1362
        %v1364 = vrcp.pop %v1354
        %v1365 = vrcp.pop %v1357
        %v1366 = vrcp.pop %v1360
        %v1367 = vrcp.pop %v1363
        %v1368 = vmul.f32 %v1345, %v1364
        %v1369 = vmul.f32 %v1347, %v1365
        %v1370 = vmul.f32 %v1349, %v1366
        %v1371 = vmul.f32 %v1351, %v1367
        %v1372 = vpack.c.bf16 %v1368, %v1368
        %v1373 = vpack.c.bf16 %v1369, %v1369
        %v1374 = vpack.c.bf16 %v1370, %v1370
        %v1375 = vpack.c.bf16 %v1371, %v1371
        %v1377 = vsel %vm1130, %v1372, 0
        %vm1379 = vcmask 1043456
        %v1381 = vsel %vm1379, %v888, 0
        %1383 = vmatprep.subr.bf16.mxu0 0
        %1384 = vmatpush1.bf16.msra.mxu0 0
        %1385 = vmatprep.subr.bf16.mxu0 0
        %1386 = vmatpush1.bf16.msra.mxu0 0
        %1387 = vmatprep.subr.bf16.mxu0 0
        %1388 = vmatpush1.bf16.msra.mxu0 0
        %1389 = vmatprep.subr.bf16.mxu0 0
        %1390 = vmatpush1.bf16.msra.mxu0 0
        %1391 = vmatprep.subr.bf16.mxu0 0
        %1392 = vmatpush1.bf16.msra.mxu0 0
        %1393 = vmatprep.subr.bf16.mxu0 0
        %1394 = vmatpush1.bf16.msra.mxu0 0
        %1395 = vmatprep.subr.bf16.mxu0 0
        %1396 = vmatpush1.bf16.msra.mxu0 0
        %1397 = vmatprep.subr.bf16.mxu0 0
        %1398 = vmatpush1.bf16.msra.mxu0 %v1381
        %1399 = vmatprep.subr.bf16.mxu0 0
        %1400 = vmatpush2.bf16.msra.mxu0 0
        %1401 = vmatprep.subr.bf16.mxu0 0
        %1402 = vmatpush2.bf16.msra.mxu0 0
        %1403 = vmatprep.subr.bf16.mxu0 0
        %1404 = vmatpush2.bf16.msra.mxu0 0
        %1405 = vmatprep.subr.bf16.mxu0 0
        %1406 = vmatpush2.bf16.msra.mxu0 0
        %1407 = vmatprep.subr.bf16.mxu0 0
        %1408 = vmatpush2.bf16.msra.mxu0 0
        %1409 = vmatprep.subr.bf16.mxu0 0
        %1410 = vmatpush2.bf16.msra.mxu0 0
        %1411 = vmatprep.subr.bf16.mxu0 0
        %1412 = vmatpush2.bf16.msra.mxu0 0
        %1413 = vmatprep.subr.bf16.mxu0 0
        %1414 = vmatpush2.bf16.msra.mxu0 0
        %1415 = vmatprep.mubr.bf16.mxu0 0
        %1416 = vmatmul.mubr.bf16.gmra.mxu0 %v1377
        %v1417 = vpop.f32.mrf.mxu0
        %v1418 = vadd.f32 0.0, %v1417
        %v1419 = vpop.f32.mrf.mxu0
        %v1420 = vpop.f32.mrf.mxu0
        %v1421 = vpop.f32.mrf.mxu0
        %1422 = vdwg.mxu0
        %v1424 = vsel %vm1130, %v1373, 0
        %v1427 = vsel %vm1379, %v891, 0
        %1429 = vmatprep.subr.bf16.mxu0 0
        %1430 = vmatpush1.bf16.msra.mxu0 0
        %1431 = vmatprep.subr.bf16.mxu0 0
        %1432 = vmatpush1.bf16.msra.mxu0 0
        %1433 = vmatprep.subr.bf16.mxu0 0
        %1434 = vmatpush1.bf16.msra.mxu0 0
        %1435 = vmatprep.subr.bf16.mxu0 0
        %1436 = vmatpush1.bf16.msra.mxu0 0
        %1437 = vmatprep.subr.bf16.mxu0 0
        %1438 = vmatpush1.bf16.msra.mxu0 0
        %1439 = vmatprep.subr.bf16.mxu0 0
        %1440 = vmatpush1.bf16.msra.mxu0 0
        %1441 = vmatprep.subr.bf16.mxu0 0
        %1442 = vmatpush1.bf16.msra.mxu0 0
        %1443 = vmatprep.subr.bf16.mxu0 0
        %1444 = vmatpush1.bf16.msra.mxu0 %v1427
        %1445 = vmatprep.subr.bf16.mxu0 0
        %1446 = vmatpush2.bf16.msra.mxu0 0
        %1447 = vmatprep.subr.bf16.mxu0 0
        %1448 = vmatpush2.bf16.msra.mxu0 0
        %1449 = vmatprep.subr.bf16.mxu0 0
        %1450 = vmatpush2.bf16.msra.mxu0 0
        %1451 = vmatprep.subr.bf16.mxu0 0
        %1452 = vmatpush2.bf16.msra.mxu0 0
        %1453 = vmatprep.subr.bf16.mxu0 0
        %1454 = vmatpush2.bf16.msra.mxu0 0
        %1455 = vmatprep.subr.bf16.mxu0 0
        %1456 = vmatpush2.bf16.msra.mxu0 0
        %1457 = vmatprep.subr.bf16.mxu0 0
        %1458 = vmatpush2.bf16.msra.mxu0 0
        %1459 = vmatprep.subr.bf16.mxu0 0
        %1460 = vmatpush2.bf16.msra.mxu0 0
        %1461 = vmatprep.mubr.bf16.mxu0 0
        %1462 = vmatmul.mubr.bf16.gmra.mxu0 %v1424
        %v1463 = vpop.f32.mrf.mxu0
        %v1464 = vadd.f32 0.0, %v1463
        %v1465 = vpop.f32.mrf.mxu0
        %v1466 = vpop.f32.mrf.mxu0
        %v1467 = vpop.f32.mrf.mxu0
        %1468 = vdwg.mxu0
        %v1470 = vsel %vm1130, %v1374, 0
        %v1473 = vsel %vm1379, %v894, 0
        %1475 = vmatprep.subr.bf16.mxu0 0
        %1476 = vmatpush1.bf16.msra.mxu0 0
        %1477 = vmatprep.subr.bf16.mxu0 0
        %1478 = vmatpush1.bf16.msra.mxu0 0
        %1479 = vmatprep.subr.bf16.mxu0 0
        %1480 = vmatpush1.bf16.msra.mxu0 0
        %1481 = vmatprep.subr.bf16.mxu0 0
        %1482 = vmatpush1.bf16.msra.mxu0 0
        %1483 = vmatprep.subr.bf16.mxu0 0
        %1484 = vmatpush1.bf16.msra.mxu0 0
        %1485 = vmatprep.subr.bf16.mxu0 0
        %1486 = vmatpush1.bf16.msra.mxu0 0
        %1487 = vmatprep.subr.bf16.mxu0 0
        %1488 = vmatpush1.bf16.msra.mxu0 0
        %1489 = vmatprep.subr.bf16.mxu0 0
        %1490 = vmatpush1.bf16.msra.mxu0 %v1473
        %1491 = vmatprep.subr.bf16.mxu0 0
        %1492 = vmatpush2.bf16.msra.mxu0 0
        %1493 = vmatprep.subr.bf16.mxu0 0
        %1494 = vmatpush2.bf16.msra.mxu0 0
        %1495 = vmatprep.subr.bf16.mxu0 0
        %1496 = vmatpush2.bf16.msra.mxu0 0
        %1497 = vmatprep.subr.bf16.mxu0 0
        %1498 = vmatpush2.bf16.msra.mxu0 0
        %1499 = vmatprep.subr.bf16.mxu0 0
        %1500 = vmatpush2.bf16.msra.mxu0 0
        %1501 = vmatprep.subr.bf16.mxu0 0
        %1502 = vmatpush2.bf16.msra.mxu0 0
        %1503 = vmatprep.subr.bf16.mxu0 0
        %1504 = vmatpush2.bf16.msra.mxu0 0
        %1505 = vmatprep.subr.bf16.mxu0 0
        %1506 = vmatpush2.bf16.msra.mxu0 0
        %1507 = vmatprep.mubr.bf16.mxu0 0
        %1508 = vmatmul.mubr.bf16.gmra.mxu0 %v1470
        %v1509 = vpop.f32.mrf.mxu0
        %v1510 = vadd.f32 0.0, %v1509
        %v1511 = vpop.f32.mrf.mxu0
        %v1512 = vpop.f32.mrf.mxu0
        %v1513 = vpop.f32.mrf.mxu0
        %1514 = vdwg.mxu0
        %v1516 = vsel %vm1130, %v1375, 0
        %v1519 = vsel %vm1379, %v897, 0
        %1521 = vmatprep.subr.bf16.mxu0 0
        %1522 = vmatpush1.bf16.msra.mxu0 0
        %1523 = vmatprep.subr.bf16.mxu0 0
        %1524 = vmatpush1.bf16.msra.mxu0 0
        %1525 = vmatprep.subr.bf16.mxu0 0
        %1526 = vmatpush1.bf16.msra.mxu0 0
        %1527 = vmatprep.subr.bf16.mxu0 0
        %1528 = vmatpush1.bf16.msra.mxu0 0
        %1529 = vmatprep.subr.bf16.mxu0 0
        %1530 = vmatpush1.bf16.msra.mxu0 0
        %1531 = vmatprep.subr.bf16.mxu0 0
        %1532 = vmatpush1.bf16.msra.mxu0 0
        %1533 = vmatprep.subr.bf16.mxu0 0
        %1534 = vmatpush1.bf16.msra.mxu0 0
        %1535 = vmatprep.subr.bf16.mxu0 0
        %1536 = vmatpush1.bf16.msra.mxu0 %v1519
        %1537 = vmatprep.subr.bf16.mxu0 0
        %1538 = vmatpush2.bf16.msra.mxu0 0
        %1539 = vmatprep.subr.bf16.mxu0 0
        %1540 = vmatpush2.bf16.msra.mxu0 0
        %1541 = vmatprep.subr.bf16.mxu0 0
        %1542 = vmatpush2.bf16.msra.mxu0 0
        %1543 = vmatprep.subr.bf16.mxu0 0
        %1544 = vmatpush2.bf16.msra.mxu0 0
        %1545 = vmatprep.subr.bf16.mxu0 0
        %1546 = vmatpush2.bf16.msra.mxu0 0
        %1547 = vmatprep.subr.bf16.mxu0 0
        %1548 = vmatpush2.bf16.msra.mxu0 0
        %1549 = vmatprep.subr.bf16.mxu0 0
        %1550 = vmatpush2.bf16.msra.mxu0 0
        %1551 = vmatprep.subr.bf16.mxu0 0
        %1552 = vmatpush2.bf16.msra.mxu0 0
        %1553 = vmatprep.mubr.bf16.mxu0 0
        %1554 = vmatmul.mubr.bf16.gmra.mxu0 %v1516
        %v1555 = vpop.f32.mrf.mxu0
        %v1556 = vadd.f32 0.0, %v1555
        %v1557 = vpop.f32.mrf.mxu0
        %v1558 = vpop.f32.mrf.mxu0
        %v1559 = vpop.f32.mrf.mxu0
        %1560 = vdwg.mxu0
        %v1561 = vcombine.low %v1418, %v1510
        %v1562 = vcombine.high %v1418, %v1510
        %v1564 = vunpack.c.l.s4 1983009808
        %v1565 = vunpack.c.0.s8 %v1564
        %v1566 = vlaneseq
        %v1567 = vshrl.u32 %v1566, 7
        %v1568 = vsub.s32 %v1565, %v1567
        %v1569 = vrot.slane %v1561, %v1568
        %v1571 = vunpack.c.l.s4 1983009808
        %v1572 = vunpack.c.0.s8 %v1571
        %v1573 = vlaneseq
        %v1574 = vshrl.u32 %v1573, 7
        %v1575 = vsub.s32 %v1572, %v1574
        %v1576 = vrot.slane %v1562, %v1575
        %v1577 = vcombine.low %v1464, %v1556
        %v1578 = vcombine.high %v1464, %v1556
        %v1580 = vunpack.c.l.s4 1983009808
        %v1581 = vunpack.c.0.s8 %v1580
        %v1582 = vlaneseq
        %v1583 = vshrl.u32 %v1582, 7
        %v1584 = vsub.s32 %v1581, %v1583
        %v1585 = vrot.slane %v1577, %v1584
        %v1587 = vunpack.c.l.s4 1983009808
        %v1588 = vunpack.c.0.s8 %v1587
        %v1589 = vlaneseq
        %v1590 = vshrl.u32 %v1589, 7
        %v1591 = vsub.s32 %v1588, %v1590
        %v1592 = vrot.slane %v1578, %v1591
        %v1593 = vcombine.low %v1569, %v1585
        %v1594 = vcombine.high %v1569, %v1585
        %v1596 = vunpack.c.l.s4 1934713408
        %v1597 = vunpack.c.0.s8 %v1596
        %v1598 = vlaneseq
        %v1599 = vshrl.u32 %v1598, 7
        %v1600 = vsub.s32 %v1597, %v1599
        %v1601 = vrot.slane %v1593, %v1600
        %v1603 = vunpack.c.l.s4 1934713408
        %v1604 = vunpack.c.0.s8 %v1603
        %v1605 = vlaneseq
        %v1606 = vshrl.u32 %v1605, 7
        %v1607 = vsub.s32 %v1604, %v1606
        %v1608 = vrot.slane %v1594, %v1607
        %v1609 = vcombine.low %v1576, %v1592
        %v1610 = vcombine.high %v1576, %v1592
        %v1612 = vunpack.c.l.s4 1934713408
        %v1613 = vunpack.c.0.s8 %v1612
        %v1614 = vlaneseq
        %v1615 = vshrl.u32 %v1614, 7
        %v1616 = vsub.s32 %v1613, %v1615
        %v1617 = vrot.slane %v1609, %v1616
        %v1619 = vunpack.c.l.s4 1934713408
        %v1620 = vunpack.c.0.s8 %v1619
        %v1621 = vlaneseq
        %v1622 = vshrl.u32 %v1621, 7
        %v1623 = vsub.s32 %v1620, %v1622
        %v1624 = vrot.slane %v1610, %v1623
        %v1625 = vcombine.high %v1601, 0.0
        %v1626 = vcombine.high %v1608, 0.0
        %v1627 = vcombine.high %v1617, 0.0
        %v1628 = vcombine.high %v1624, 0.0
        %v1629 = vcombine.low %v1601, %v1608
        %v1631 = vunpack.c.l.s4 1983009808
        %v1632 = vunpack.c.0.s8 %v1631
        %v1633 = vlaneseq
        %v1634 = vshrl.u32 %v1633, 7
        %v1635 = vsub.s32 %v1632, %v1634
        %v1636 = vrot.slane %v1629, %v1635
        %v1637 = vcombine.low %v1625, %v1626
        %v1639 = vunpack.c.l.s4 1983009808
        %v1640 = vunpack.c.0.s8 %v1639
        %v1641 = vlaneseq
        %v1642 = vshrl.u32 %v1641, 7
        %v1643 = vsub.s32 %v1640, %v1642
        %v1644 = vrot.slane %v1637, %v1643
        %v1645 = vcombine.low %v1617, %v1624
        %v1647 = vunpack.c.l.s4 1983009808
        %v1648 = vunpack.c.0.s8 %v1647
        %v1649 = vlaneseq
        %v1650 = vshrl.u32 %v1649, 7
        %v1651 = vsub.s32 %v1648, %v1650
        %v1652 = vrot.slane %v1645, %v1651
        %v1653 = vcombine.low %v1627, %v1628
        %v1655 = vunpack.c.l.s4 1983009808
        %v1656 = vunpack.c.0.s8 %v1655
        %v1657 = vlaneseq
        %v1658 = vshrl.u32 %v1657, 7
        %v1659 = vsub.s32 %v1656, %v1658
        %v1660 = vrot.slane %v1653, %v1659
        %v1661 = vcombine.low %v1636, %v1644
        %v1662 = vcombine.high %v1636, %v1644
        %v1664 = vunpack.c.l.s4 1934713408
        %v1665 = vunpack.c.0.s8 %v1664
        %v1666 = vlaneseq
        %v1667 = vshrl.u32 %v1666, 7
        %v1668 = vsub.s32 %v1665, %v1667
        %v1669 = vrot.slane %v1661, %v1668
        %v1671 = vunpack.c.l.s4 1934713408
        %v1672 = vunpack.c.0.s8 %v1671
        %v1673 = vlaneseq
        %v1674 = vshrl.u32 %v1673, 7
        %v1675 = vsub.s32 %v1672, %v1674
        %v1676 = vrot.slane %v1662, %v1675
        %v1677 = vcombine.low %v1652, %v1660
        %v1678 = vcombine.high %v1652, %v1660
        %v1680 = vunpack.c.l.s4 1934713408
        %v1681 = vunpack.c.0.s8 %v1680
        %v1682 = vlaneseq
        %v1683 = vshrl.u32 %v1682, 7
        %v1684 = vsub.s32 %v1681, %v1683
        %v1685 = vrot.slane %v1677, %v1684
        %v1687 = vunpack.c.l.s4 1934713408
        %v1688 = vunpack.c.0.s8 %v1687
        %v1689 = vlaneseq
        %v1690 = vshrl.u32 %v1689, 7
        %v1691 = vsub.s32 %v1688, %v1690
        %v1692 = vrot.slane %v1678, %v1691
        %v1693 = vcombine.low %v1669, %v1685
        %v1694 = vcombine.high %v1669, %v1685
        %v1695 = vcombine.low %v1676, %v1692
        %v1696 = vcombine.high %v1676, %v1692
        %1698 = vrot.lane.b32.xlu0 %v1694, 8
        %v1699 = vpop.permute.xlu0 %1698
        %1702 = vrot.lane.b32.xlu0 %v1695, 16
        %v1703 = vpop.permute.xlu0 %1702
        %1706 = vrot.lane.b32.xlu0 %v1696, 24
        %v1707 = vpop.permute.xlu0 %1706
        %v1709 = vsel %vm1130, %v1693, %v1699
        %vm1710 = vcmask 130048
        %v1711 = vsel %vm1710, %v1709, %v1703
        %vm1712 = vcmask 195584
        %v1713 = vsel %vm1712, %v1711, %v1707
        %v1714 = vpack.c.bf16 %v1713, %v1713
        %v1715 = vld [vmem:[%s5] sm:$0xf]
        %v1716 = vld [vmem:[%s5 + $0x4] sm:$0xf]
        %v1717 = vld [vmem:[%s5 + $0x8] sm:$0xf]
        %v1718 = vld [vmem:[%s5 + $0xc] sm:$0xf]
        %v1719 = vld [vmem:[%s6] sm:$0x1]
        %v1721 = vlaneseq
        %v1722 = vshrl.u32 %v1721, 7
        %v1723 = vsub.s32 0, %v1722
        %v1724 = vrot.slane %v1719, %v1723
        %v1730 = vunpack.c.l.b16 %v1715
        %v1731 = vunpack.c.l.b16 %v1716
        %v1732 = vunpack.c.l.b16 %v1717
        %v1733 = vunpack.c.l.b16 %v1718
        %v1734 = vpack.c.b16 %v1731, %v1730
        %v1735 = vpack.c.b16 %v1733, %v1732
        %v1739 = vsel %vm462, %v1714, 0
        %1741 = vmatprep.subr.bf16.mxu0 0
        %1742 = vmatpush1.bf16.msra.mxu0 0
        %1743 = vmatprep.subr.bf16.mxu0 0
        %1744 = vmatpush1.bf16.msra.mxu0 0
        %1745 = vmatprep.subr.bf16.mxu0 0
        %1746 = vmatpush1.bf16.msra.mxu0 0
        %1747 = vmatprep.subr.bf16.mxu0 0
        %1748 = vmatpush1.bf16.msra.mxu0 0
        %1749 = vmatprep.subr.bf16.mxu0 0
        %1750 = vmatpush1.bf16.msra.mxu0 0
        %1751 = vmatprep.subr.bf16.mxu0 0
        %1752 = vmatpush1.bf16.msra.mxu0 0
        %1753 = vmatprep.subr.bf16.mxu0 0
        %1754 = vmatpush1.bf16.msra.mxu0 %v1735
        %1755 = vmatprep.subr.bf16.mxu0 0
        %1756 = vmatpush1.bf16.msra.mxu0 %v1734
        %1757 = vmatprep.subr.bf16.mxu0 0
        %1758 = vmatpush2.bf16.msra.mxu0 0
        %1759 = vmatprep.subr.bf16.mxu0 0
        %1760 = vmatpush2.bf16.msra.mxu0 0
        %1761 = vmatprep.subr.bf16.mxu0 0
        %1762 = vmatpush2.bf16.msra.mxu0 0
        %1763 = vmatprep.subr.bf16.mxu0 0
        %1764 = vmatpush2.bf16.msra.mxu0 0
        %1765 = vmatprep.subr.bf16.mxu0 0
        %1766 = vmatpush2.bf16.msra.mxu0 0
        %1767 = vmatprep.subr.bf16.mxu0 0
        %1768 = vmatpush2.bf16.msra.mxu0 0
        %1769 = vmatprep.subr.bf16.mxu0 0
        %1770 = vmatpush2.bf16.msra.mxu0 0
        %1771 = vmatprep.subr.bf16.mxu0 0
        %1772 = vmatpush2.bf16.msra.mxu0 0
        %1773 = vmatprep.mubr.bf16.mxu0 0
        %1774 = vmatmul.mubr.bf16.gmra.mxu0 %v1739
        %v1775 = vpop.f32.mrf.mxu0
        %v1776 = vadd.f32 %v1724, %v1775
        %v1777 = vpop.f32.mrf.mxu0
        %v1778 = vpop.f32.mrf.mxu0
        %v1779 = vpop.f32.mrf.mxu0
        %1780 = vdwg.mxu0
        %v1781 = vadd.f32 %v461, %v1776
        %v1782 = vld [vmem:[%s7] sm:$0x1]
        %v1783 = vld [vmem:[%s8] sm:$0x1]
        %v1784 = vsel %vm462, %v1781, 0.0
        %1785 = vadd.xlane.f32.xlu0 %v1784
        %v1786 = vpop.xlane.xlu0 %1785
        %v1787 = vmul.f32 %v1786, %v466
        %v1788 = vsub.f32 %v1781, %v1787
        %v1789 = vmul.f32 %v1788, %v1788
        %v1790 = vsel %vm462, %v1789, 0.0
        %1791 = vadd.xlane.f32.xlu0 %v1790
        %v1792 = vpop.xlane.xlu0 %1791
        %v1793 = vmul.f32 %v1792, %v466
        %v1794 = vadd.f32 %v1793, 1e-05
        %v1795 = vrsqrt.pop %v1794
        %v1796 = vmul.f32 %v1788, %v1795
        %v1798 = vlaneseq
        %v1799 = vshrl.u32 %v1798, 7
        %v1800 = vsub.s32 0, %v1799
        %v1801 = vrot.slane %v1782, %v1800
        %v1803 = vmul.f32 %v1796, %v1801
        %v1805 = vlaneseq
        %v1806 = vshrl.u32 %v1805, 7
        %v1807 = vsub.s32 0, %v1806
        %v1808 = vrot.slane %v1783, %v1807
        %v1810 = vadd.f32 %v1803, %v1808
        %v1811 = vpack.c.bf16 %v1810, %v1810
        %v1812 = vld [vmem:[%s9] sm:$0xf]
        %v1813 = vld [vmem:[%s9 + $0x4] sm:$0xf]
        %v1814 = vld [vmem:[%s9 + $0x8] sm:$0xf]
        %v1815 = vld [vmem:[%s9 + $0xc] sm:$0xf]
        %v1816 = vld [vmem:[%s10] sm:$0x1]
        %v1818 = vlaneseq
        %v1819 = vshrl.u32 %v1818, 7
        %v1820 = vsub.s32 0, %v1819
        %v1821 = vrot.slane %v1816, %v1820
        %v1827 = vunpack.c.l.b16 %v1812
        %v1828 = vunpack.c.l.b16 %v1813
        %v1829 = vunpack.c.l.b16 %v1814
        %v1830 = vunpack.c.l.b16 %v1815
        %v1831 = vpack.c.b16 %v1828, %v1827
        %v1832 = vpack.c.b16 %v1830, %v1829
        %v1836 = vsel %vm462, %v1811, 0
        %1838 = vmatprep.subr.bf16.mxu0 0
        %1839 = vmatpush1.bf16.msra.mxu0 0
        %1840 = vmatprep.subr.bf16.mxu0 0
        %1841 = vmatpush1.bf16.msra.mxu0 0
        %1842 = vmatprep.subr.bf16.mxu0 0
        %1843 = vmatpush1.bf16.msra.mxu0 0
        %1844 = vmatprep.subr.bf16.mxu0 0
        %1845 = vmatpush1.bf16.msra.mxu0 0
        %1846 = vmatprep.subr.bf16.mxu0 0
        %1847 = vmatpush1.bf16.msra.mxu0 0
        %1848 = vmatprep.subr.bf16.mxu0 0
        %1849 = vmatpush1.bf16.msra.mxu0 0
        %1850 = vmatprep.subr.bf16.mxu0 0
        %1851 = vmatpush1.bf16.msra.mxu0 %v1832
        %1852 = vmatprep.subr.bf16.mxu0 0
        %1853 = vmatpush1.bf16.msra.mxu0 %v1831
        %1854 = vmatprep.subr.bf16.mxu0 0
        %1855 = vmatpush2.bf16.msra.mxu0 0
        %1856 = vmatprep.subr.bf16.mxu0 0
        %1857 = vmatpush2.bf16.msra.mxu0 0
        %1858 = vmatprep.subr.bf16.mxu0 0
        %1859 = vmatpush2.bf16.msra.mxu0 0
        %1860 = vmatprep.subr.bf16.mxu0 0
        %1861 = vmatpush2.bf16.msra.mxu0 0
        %1862 = vmatprep.subr.bf16.mxu0 0
        %1863 = vmatpush2.bf16.msra.mxu0 0
        %1864 = vmatprep.subr.bf16.mxu0 0
        %1865 = vmatpush2.bf16.msra.mxu0 0
        %1866 = vmatprep.subr.bf16.mxu0 0
        %1867 = vmatpush2.bf16.msra.mxu0 0
        %1868 = vmatprep.subr.bf16.mxu0 0
        %1869 = vmatpush2.bf16.msra.mxu0 0
        %1870 = vmatprep.mubr.bf16.mxu0 0
        %1871 = vmatmul.mubr.bf16.gmra.mxu0 %v1836
        %v1872 = vpop.f32.mrf.mxu0
        %v1873 = vadd.f32 %v1821, %v1872
        %v1874 = vpop.f32.mrf.mxu0
        %v1875 = vpop.f32.mrf.mxu0
        %v1876 = vpop.f32.mrf.mxu0
        %1877 = vdwg.mxu0
        %v1878 = vmul.f32 %v1873, 0.5
        %v1879 = vmul.f32 %v1873, 0.044715
        %v1880 = vmul.f32 %v1879, %v1873
        %v1881 = vmul.f32 %v1880, %v1873
        %v1882 = vadd.f32 %v1873, %v1881
        %v1883 = vmul.f32 %v1882, 0.7978846
        %v1884 = vtanh.pop %v1883
        %v1885 = vadd.f32 %v1884, 1.0
        %v1886 = vmul.f32 %v1878, %v1885
        %v1887 = vpack.c.bf16 %v1886, %v1886
        %v1888 = vld [vmem:[%s11] sm:$0xf]
        %v1889 = vld [vmem:[%s11 + $0x4] sm:$0xf]
        %v1890 = vld [vmem:[%s11 + $0x8] sm:$0xf]
        %v1891 = vld [vmem:[%s11 + $0xc] sm:$0xf]
        %v1892 = vld [vmem:[%s11 + $0x10] sm:$0xf]
        %v1893 = vld [vmem:[%s11 + $0x14] sm:$0xf]
        %v1894 = vld [vmem:[%s11 + $0x18] sm:$0xf]
        %v1895 = vld [vmem:[%s11 + $0x1c] sm:$0xf]
        %v1896 = vld [vmem:[%s11 + $0x20] sm:$0xf]
        %v1897 = vld [vmem:[%s11 + $0x24] sm:$0xf]
        %v1898 = vld [vmem:[%s11 + $0x28] sm:$0xf]
        %v1899 = vld [vmem:[%s11 + $0x2c] sm:$0xf]
        %v1900 = vld [vmem:[%s11 + $0x30] sm:$0xf]
        %v1901 = vld [vmem:[%s11 + $0x34] sm:$0xf]
        %v1902 = vld [vmem:[%s11 + $0x38] sm:$0xf]
        %v1903 = vld [vmem:[%s11 + $0x3c] sm:$0xf]
        %v1904 = vld [vmem:[%s12] sm:$0x1]
        %v1906 = vlaneseq
        %v1907 = vshrl.u32 %v1906, 7
        %v1908 = vsub.s32 0, %v1907
        %v1909 = vrot.slane %v1904, %v1908
        %v1927 = vunpack.c.l.b16 %v1888
        %v1928 = vunpack.c.l.b16 %v1889
        %v1929 = vunpack.c.l.b16 %v1890
        %v1930 = vunpack.c.l.b16 %v1891
        %v1931 = vunpack.c.l.b16 %v1892
        %v1932 = vunpack.c.l.b16 %v1893
        %v1933 = vunpack.c.l.b16 %v1894
        %v1934 = vunpack.c.l.b16 %v1895
        %v1935 = vunpack.c.l.b16 %v1896
        %v1936 = vunpack.c.l.b16 %v1897
        %v1937 = vunpack.c.l.b16 %v1898
        %v1938 = vunpack.c.l.b16 %v1899
        %v1939 = vunpack.c.l.b16 %v1900
        %v1940 = vunpack.c.l.b16 %v1901
        %v1941 = vunpack.c.l.b16 %v1902
        %v1942 = vunpack.c.l.b16 %v1903
        %v1943 = vpack.c.b16 %v1928, %v1927
        %v1944 = vpack.c.b16 %v1930, %v1929
        %v1945 = vpack.c.b16 %v1932, %v1931
        %v1946 = vpack.c.b16 %v1934, %v1933
        %v1947 = vpack.c.b16 %v1936, %v1935
        %v1948 = vpack.c.b16 %v1938, %v1937
        %v1949 = vpack.c.b16 %v1940, %v1939
        %v1950 = vpack.c.b16 %v1942, %v1941
        %1959 = vmatprep.subr.bf16.mxu0 0
        %1960 = vmatpush1.bf16.msra.mxu0 %v1950
        %1961 = vmatprep.subr.bf16.mxu0 0
        %1962 = vmatpush1.bf16.msra.mxu0 %v1949
        %1963 = vmatprep.subr.bf16.mxu0 0
        %1964 = vmatpush1.bf16.msra.mxu0 %v1948
        %1965 = vmatprep.subr.bf16.mxu0 0
        %1966 = vmatpush1.bf16.msra.mxu0 %v1947
        %1967 = vmatprep.subr.bf16.mxu0 0
        %1968 = vmatpush1.bf16.msra.mxu0 %v1946
        %1969 = vmatprep.subr.bf16.mxu0 0
        %1970 = vmatpush1.bf16.msra.mxu0 %v1945
        %1971 = vmatprep.subr.bf16.mxu0 0
        %1972 = vmatpush1.bf16.msra.mxu0 %v1944
        %1973 = vmatprep.subr.bf16.mxu0 0
        %1974 = vmatpush1.bf16.msra.mxu0 %v1943
        %1975 = vmatprep.subr.bf16.mxu0 0
        %1976 = vmatpush2.bf16.msra.mxu0 0
        %1977 = vmatprep.subr.bf16.mxu0 0
        %1978 = vmatpush2.bf16.msra.mxu0 0
        %1979 = vmatprep.subr.bf16.mxu0 0
        %1980 = vmatpush2.bf16.msra.mxu0 0
        %1981 = vmatprep.subr.bf16.mxu0 0
        %1982 = vmatpush2.bf16.msra.mxu0 0
        %1983 = vmatprep.subr.bf16.mxu0 0
        %1984 = vmatpush2.bf16.msra.mxu0 0
        %1985 = vmatprep.subr.bf16.mxu0 0
        %1986 = vmatpush2.bf16.msra.mxu0 0
        %1987 = vmatprep.subr.bf16.mxu0 0
        %1988 = vmatpush2.bf16.msra.mxu0 0
        %1989 = vmatprep.subr.bf16.mxu0 0
        %1990 = vmatpush2.bf16.msra.mxu0 0
        %1991 = vmatprep.mubr.bf16.mxu0 0
        %1992 = vmatmul.mubr.bf16.gmra.mxu0 %v1887
        %v1993 = vpop.f32.mrf.mxu0
        %v1994 = vadd.f32 %v1909, %v1993
        %v1995 = vpop.f32.mrf.mxu0
        %v1996 = vpop.f32.mrf.mxu0
        %v1997 = vpop.f32.mrf.mxu0
        %1998 = vdwg.mxu0
        %v1999 = vadd.f32 %v1781, %v1994
        %2000 = vst.msk [vmem:[%s445] sm:$0xff] %vm462, %v1999
        %s2001 = sand.u32 %s327, 1
        %s2002 = scalar_lea.sflag [#allocation3], %s2001
        %s2003 = sand.u32 %s327, 1
        %s2004 = smul.addr %s2003, 8
        %s2005 = scalar_lea.vmem [#allocation2], %s2004
        // Predicated region
        $region73: #{tpu_custom_call.1} parent=71 // pred_check
          %p2006 = pneg %p337
        $region74: #{tpu_custom_call.1} parent=71 // pred_check_branch
          %2008 = sbr.rel (%p2006) target = $region76
        $region75: #{tpu_custom_call.1} parent=71 // pred_region
          %s2010 = ssub.s32 128, 128
          %2011 = vsyncadd %s2002, %s2010
          %s2012 = sadd.s32 %s32, %s31
          %s2013 = smul.addr %s2012, 128
          %s2014 = scalar_lea.hbm %s13, %s2013
          %s2016 = sshll.u32 %s2005, 4
          %s2017 = int_to_ptr.vmem [resolvable:$true] %s2016
          %2019 = dma.vmem_to_hbm [thread:$0]  %s2017, 128, %s2014, %s2002
        $region76: #{tpu_custom_call.1} parent=71 // pred_fallthru
          _
      $region72: #{tpu_custom_call.1} parent=5 // pred_fallthru
        _
      %p2020 = scmp.le.s32.totalorder 2, %s22
      // Predicated region
      $region77: #{tpu_custom_call.1} parent=5 // pred_check
        %p2021 = pneg %p2020
      $region78: #{tpu_custom_call.1} parent=5 // pred_check_branch
        %2023 = sbr.rel (%p2021) target = $region80
      $region79: #{tpu_custom_call.1} parent=5 // pred_region
        %s2024 = ssub.s32 %s22, 2
        // Predicated region
        $region81: #{tpu_custom_call.1} parent=79 // pred_check
          %p2025 = pneg %p343
        $region82: #{tpu_custom_call.1} parent=79 // pred_check_branch
          %2027 = sbr.rel (%p2025) target = $region84
        $region83: #{tpu_custom_call.1} parent=79 // pred_region
          %s2028 = sand.u32 %s328, 1
          %s2029 = scalar_lea.sflag [#allocation3], %s2028
          %s2030 = sand.u32 %s328, 1
          %s2031 = smul.addr %s2030, 8
          %s2032 = scalar_lea.vmem [#allocation2], %s2031
          %2033 = dma.done %s2029, 128
        $region84: #{tpu_custom_call.1} parent=79 // pred_fallthru
          _
      $region80: #{tpu_custom_call.1} parent=5 // pred_fallthru
        _
    $region6: #{tpu_custom_call.1} parent=1 // loop_footer
      %s26 = sadd.s32 1, %s22
    $region7: #{tpu_custom_call.1} parent=1 // loop_footer_branch
      %21 = sbr.rel target = $region3
    $region8: #{tpu_custom_call.1} parent=1 // loop_exit
      _
    %2034 = vsyncpa [#allocation3], 1
    %s2035 = scalar_lea.sflag [#allocation3], 1
    %2036 = vsyncpa %s2035, 1

</llo_original>
